<compile_context>
chip_gen: v7x
topology: tpu7x:2x2x1
jax: 0.10.0
libtpu: 0.0.40
codegen_flags: <defaults>
</compile_context>

<pallas_src>
import functools

import jax
import jax.numpy as jnp
from jax import lax
from jax.experimental import pallas as pl
from jax.experimental.pallas import tpu as pltpu


def _sa_kernel(x_ref, w_ref, o_ref, pad_ref, shf_ref, acc_ref, *,
               C, NB, H, W, K, P):
    # x_ref  : (NB, CT, H, W)   VMEM  current batch block / channel tile
    # w_ref  : (2*K*K,)         SMEM  flattened conv weight (OIHW, O=1)
    # o_ref  : (NB, H, W)       VMEM  output block (sigmoid attention map)
    # pad_ref: (2, NB*Hp, Wp)   VMEM  zero-padded [sum, max] maps; batch is
    #                                 packed along the sublane (row) axis
    # shf_ref: (2, K, NB*Hp, W) VMEM  kw-pre-shifted, lane-aligned columns
    # acc_ref: (Ht, W)          VMEM  stacked conv accumulator
    Hp = H + 2 * P
    Ht = NB * Hp - 2 * P
    ck = pl.program_id(1)
    n_ck = pl.num_programs(1)

    # ---- channel reduction, accumulated into the padded scratch -----------
    @pl.when(ck == 0)
    def _first_channel_tile():
        # Fresh batch block: zero the padded scratch once (the borders must
        # stay zero for "same" padding), then write this tile's partial
        # sum / max into each image's interior.
        pad_ref[...] = jnp.zeros_like(pad_ref)
        for b in range(NB):
            xb = x_ref[b].astype(jnp.float32)          # (CT, H, W)
            r0 = b * Hp + P
            pad_ref[0, r0:r0 + H, P:P + W] = jnp.sum(xb, axis=0)
            pad_ref[1, r0:r0 + H, P:P + W] = jnp.max(xb, axis=0)

    @pl.when(ck > 0)
    def _next_channel_tiles():
        for b in range(NB):
            xb = x_ref[b].astype(jnp.float32)
            r0 = b * Hp + P
            pad_ref[0, r0:r0 + H, P:P + W] = (
                pad_ref[0, r0:r0 + H, P:P + W] + jnp.sum(xb, axis=0))
            pad_ref[1, r0:r0 + H, P:P + W] = jnp.maximum(
                pad_ref[1, r0:r0 + H, P:P + W], jnp.max(xb, axis=0))

    # ---- finalize on the last channel tile: 7x7 conv + sigmoid ------------
    @pl.when(ck == n_ck - 1)
    def _finalize():
        # Turn the running channel sum into the channel mean (one vector op).
        pad_ref[0, :, :] = pad_ref[0, :, :] * jnp.float32(1.0 / C)

        # Hoist the kw lane shifts out of the MAC loop:
        # 2 * K lane-offset slices instead of 2 * K * K.
        for c in range(2):
            for kw in range(K):
                shf_ref[c, kw] = pad_ref[c, :, kw:kw + W]

        # 2*K*K shifted multiply-accumulates over the whole image stack.
        # fori over kh bounds vreg live ranges; c/kw unrolled; every slice is
        # lane-aligned (only a sublane offset of kh).
        acc_ref[...] = jnp.zeros_like(acc_ref)

        def kh_body(kh, carry):
            a = acc_ref[...]
            for c in range(2):
                for kw in range(K):
                    wval = w_ref[c * K * K + kh * K + kw]   # SMEM scalar read
                    a = a + shf_ref[c, kw, pl.ds(kh, Ht), :] * wval
            acc_ref[...] = a
            return carry

        lax.fori_loop(0, K, kh_body, 0)

        # Sigmoid + store each image's rows of the stacked accumulator.
        for b in range(NB):
            r0 = b * Hp
            o_ref[b] = jax.nn.sigmoid(acc_ref[r0:r0 + H, :]).astype(o_ref.dtype)


def _largest_divisor(n, cap):
    best = 1
    for d in range(1, min(n, cap) + 1):
        if n % d == 0:
            best = d
    return best


def spatial_attention(x, w, kernel_size=7, *, batch_block=None,
                      channel_block=None):
    """x: (N, C, H, W), w: (1, 2, K, K) -> (N, 1, H, W) attention map."""
    assert kernel_size in (3, 7), "kernel size must be 3 or 7"
    N, C, H, W = x.shape
    K = kernel_size
    P = 3 if K == 7 else 1
    Hp = H + 2 * P

    # Batch block: amortize per-grid-step overhead; keep scratch modest.
    if batch_block is None:
        batch_block = _largest_divisor(N, 8)
    NB = batch_block
    assert N % NB == 0

    # Channel tile: largest divisor of C whose (double-buffered) input block
    # stays within a ~2 MiB budget -> safe on v5e/v6e/v7x scoped VMEM.
    if channel_block is None:
        per_c_bytes = NB * H * W * x.dtype.itemsize
        budget = 2 * 1024 * 1024
        channel_block = 1
        for d in range(1, C + 1):
            if C % d == 0 and d * per_c_bytes <= budget:
                channel_block = d
    CT = channel_block
    assert C % CT == 0

    Ht = NB * Hp - 2 * P
    w_flat = w.reshape(-1).astype(jnp.float32)          # (2*K*K,)

    kernel = functools.partial(_sa_kernel, C=C, NB=NB, H=H, W=W, K=K, P=P)

    out = pl.pallas_call(
        kernel,
        out_shape=jax.ShapeDtypeStruct((N, H, W), x.dtype),
        grid=(N // NB, C // CT),
        in_specs=[
            pl.BlockSpec((NB, CT, H, W), lambda nb, ck: (nb, ck, 0, 0)),
            pl.BlockSpec(memory_space=pltpu.MemorySpace.SMEM),
        ],
        out_specs=pl.BlockSpec((NB, H, W), lambda nb, ck: (nb, 0, 0)),
        scratch_shapes=[
            pltpu.VMEM((2, NB * Hp, W + 2 * P), jnp.float32),   # padded maps
            pltpu.VMEM((2, K, NB * Hp, W), jnp.float32),        # kw pre-shift
            pltpu.VMEM((Ht, W), jnp.float32),                   # conv acc
        ],
        compiler_params=pltpu.CompilerParams(
            dimension_semantics=("parallel", "arbitrary")),
    )(x, w_flat)

    return out.reshape(N, 1, H, W)                       # free metadata reshape


def _reference(x, w, kernel_size=7):
    # Pure-JAX reference matching torch semantics (NCHW, OIHW, same padding).
    P = 3 if kernel_size == 7 else 1
    avg = jnp.mean(x, axis=1, keepdims=True)
    mx = jnp.max(x, axis=1, keepdims=True)
    feat = jnp.concatenate([avg, mx], axis=1)
    out = lax.conv_general_dilated(
        feat, w,
        window_strides=(1, 1),
        padding=((P, P), (P, P)),
        dimension_numbers=("NCHW", "OIHW", "NCHW"),
    )
    return jax.nn.sigmoid(out)


if __name__ == "__main__":
    key = jax.random.PRNGKey(0)
    kx, kw = jax.random.split(key)

    N, C, H, W = 2, 4, 16, 16
    K = 7

    x = jax.random.normal(kx, (N, C, H, W), dtype=jnp.float32)
    # Synthetic conv1 weight (shape from nn.Conv2d(2, 1, 7, bias=False)).
    w = 0.1 * jax.random.normal(kw, (1, 2, K, K), dtype=jnp.float32)

    out = spatial_attention(x, w, kernel_size=K)
    out = jax.block_until_ready(out)

    ref = _reference(x, w, kernel_size=K)
    assert out.shape == (N, 1, H, W)
    assert jnp.allclose(out, ref, atol=1e-5, rtol=1e-5)

    print("KERNEL_OK")
</pallas_src>

<mosaic_0001>
module attributes {stable_mosaic.version = 11 : i64} {
  func.func @_sa_kernel(%arg0: i32, %arg1: i32, %arg2: memref<2x4x16x16xf32, #tpu.memory_space<vmem>>, %arg3: memref<98xf32, #tpu.memory_space<smem>>, %arg4: memref<2x16x16xf32, #tpu.memory_space<vmem>>, %arg5: memref<2x44x22xf32, #tpu.memory_space<vmem>>, %arg6: memref<2x7x44x16xf32, #tpu.memory_space<vmem>>, %arg7: memref<38x16xf32, #tpu.memory_space<vmem>>) attributes {dimension_semantics = [#tpu.dimension_semantics<parallel>, #tpu.dimension_semantics<arbitrary>], iteration_bounds = array<i64: 1, 1>, scalar_prefetch = 0 : i64, scratch_operands = 3 : i64, tpu.core_type = #tpu.core_type<tc>, window_params = [{transform_indices = @transform_0, window_bounds = array<i64: 2, 4, 16, 16>}, {transform_indices = @transform_1, window_bounds = array<i64: 98>}, {transform_indices = @transform_2, window_bounds = array<i64: 2, 16, 16>}]} {
    %c0_i32 = arith.constant 0 : i32
    %0 = arith.cmpi eq, %arg1, %c0_i32 : i32
    %1 = arith.extui %0 : i1 to i32
    %c0_i32_0 = arith.constant 0 : i32
    %2 = arith.cmpi ne, %1, %c0_i32_0 : i32
    scf.if %2 {
      %cst = arith.constant 0.000000e+00 : f32
      %9 = vector.broadcast %cst : f32 to vector<2x44x22xf32>
      %c0 = arith.constant 0 : index
      %c0_5 = arith.constant 0 : index
      %c0_6 = arith.constant 0 : index
      %10 = vector.load %arg5[%c0, %c0_5, %c0_6] : memref<2x44x22xf32, #tpu.memory_space<vmem>>, vector<2x44x22xf32>
      tpu.vector_store %arg5[%c0, %c0_5, %c0_6], %9 {strides = array<i32>} : memref<2x44x22xf32, #tpu.memory_space<vmem>>, vector<2x44x22xf32>,
      %c0_7 = arith.constant 0 : index
      %c0_8 = arith.constant 0 : index
      %c0_9 = arith.constant 0 : index
      %c0_10 = arith.constant 0 : index
      %11 = vector.load %arg2[%c0_7, %c0_8, %c0_9, %c0_10] : memref<2x4x16x16xf32, #tpu.memory_space<vmem>>, vector<1x4x16x16xf32>
      %12 = vector.shape_cast %11 : vector<1x4x16x16xf32> to vector<4x16x16xf32>
      %cst_11 = arith.constant dense<0.000000e+00> : vector<16x16xf32>
      %13 = vector.multi_reduction <add>, %12, %cst_11 [0] : vector<4x16x16xf32> to vector<16x16xf32>
      %c0_12 = arith.constant 0 : index
      %c3 = arith.constant 3 : index
      %c3_13 = arith.constant 3 : index
      %14 = vector.load %arg5[%c0_12, %c3, %c3_13] : memref<2x44x22xf32, #tpu.memory_space<vmem>>, vector<1x16x16xf32>
      %15 = vector.shape_cast %14 : vector<1x16x16xf32> to vector<16x16xf32>
      %16 = vector.shape_cast %13 : vector<16x16xf32> to vector<1x16x16xf32>
      tpu.vector_store %arg5[%c0_12, %c3, %c3_13], %16 {strides = array<i32>} : memref<2x44x22xf32, #tpu.memory_space<vmem>>, vector<1x16x16xf32>,
      %cst_14 = arith.constant dense<0xFF800000> : vector<16x16xf32>
      %17 = vector.multi_reduction <maximumf>, %12, %cst_14 [0] : vector<4x16x16xf32> to vector<16x16xf32>
      %c1 = arith.constant 1 : index
      %c3_15 = arith.constant 3 : index
      %c3_16 = arith.constant 3 : index
      %18 = vector.load %arg5[%c1, %c3_15, %c3_16] : memref<2x44x22xf32, #tpu.memory_space<vmem>>, vector<1x16x16xf32>
      %19 = vector.shape_cast %18 : vector<1x16x16xf32> to vector<16x16xf32>
      %20 = vector.shape_cast %17 : vector<16x16xf32> to vector<1x16x16xf32>
      tpu.vector_store %arg5[%c1, %c3_15, %c3_16], %20 {strides = array<i32>} : memref<2x44x22xf32, #tpu.memory_space<vmem>>, vector<1x16x16xf32>,
      %c1_17 = arith.constant 1 : index
      %c0_18 = arith.constant 0 : index
      %c0_19 = arith.constant 0 : index
      %c0_20 = arith.constant 0 : index
      %21 = vector.load %arg2[%c1_17, %c0_18, %c0_19, %c0_20] : memref<2x4x16x16xf32, #tpu.memory_space<vmem>>, vector<1x4x16x16xf32>
      %22 = vector.shape_cast %21 : vector<1x4x16x16xf32> to vector<4x16x16xf32>
      %cst_21 = arith.constant dense<0.000000e+00> : vector<16x16xf32>
      %23 = vector.multi_reduction <add>, %22, %cst_21 [0] : vector<4x16x16xf32> to vector<16x16xf32>
      %c0_22 = arith.constant 0 : index
      %c25 = arith.constant 25 : index
      %c3_23 = arith.constant 3 : index
      %24 = vector.load %arg5[%c0_22, %c25, %c3_23] : memref<2x44x22xf32, #tpu.memory_space<vmem>>, vector<1x16x16xf32>
      %25 = vector.shape_cast %24 : vector<1x16x16xf32> to vector<16x16xf32>
      %26 = vector.shape_cast %23 : vector<16x16xf32> to vector<1x16x16xf32>
      tpu.vector_store %arg5[%c0_22, %c25, %c3_23], %26 {strides = array<i32>} : memref<2x44x22xf32, #tpu.memory_space<vmem>>, vector<1x16x16xf32>,
      %cst_24 = arith.constant dense<0xFF800000> : vector<16x16xf32>
      %27 = vector.multi_reduction <maximumf>, %22, %cst_24 [0] : vector<4x16x16xf32> to vector<16x16xf32>
      %c1_25 = arith.constant 1 : index
      %c25_26 = arith.constant 25 : index
      %c3_27 = arith.constant 3 : index
      %28 = vector.load %arg5[%c1_25, %c25_26, %c3_27] : memref<2x44x22xf32, #tpu.memory_space<vmem>>, vector<1x16x16xf32>
      %29 = vector.shape_cast %28 : vector<1x16x16xf32> to vector<16x16xf32>
      %30 = vector.shape_cast %27 : vector<16x16xf32> to vector<1x16x16xf32>
      tpu.vector_store %arg5[%c1_25, %c25_26, %c3_27], %30 {strides = array<i32>} : memref<2x44x22xf32, #tpu.memory_space<vmem>>, vector<1x16x16xf32>,
    } else {
    }
    %c0_i32_1 = arith.constant 0 : i32
    %3 = arith.cmpi sgt, %arg1, %c0_i32_1 : i32
    %4 = arith.extui %3 : i1 to i32
    %c0_i32_2 = arith.constant 0 : i32
    %5 = arith.cmpi ne, %4, %c0_i32_2 : i32
    scf.if %5 {
      %c0 = arith.constant 0 : index
      %c0_5 = arith.constant 0 : index
      %c0_6 = arith.constant 0 : index
      %c0_7 = arith.constant 0 : index
      %9 = vector.load %arg2[%c0, %c0_5, %c0_6, %c0_7] : memref<2x4x16x16xf32, #tpu.memory_space<vmem>>, vector<1x4x16x16xf32>
      %10 = vector.shape_cast %9 : vector<1x4x16x16xf32> to vector<4x16x16xf32>
      %c0_8 = arith.constant 0 : index
      %c3 = arith.constant 3 : index
      %c3_9 = arith.constant 3 : index
      %11 = vector.load %arg5[%c0_8, %c3, %c3_9] : memref<2x44x22xf32, #tpu.memory_space<vmem>>, vector<1x16x16xf32>
      %12 = vector.shape_cast %11 : vector<1x16x16xf32> to vector<16x16xf32>
      %cst = arith.constant dense<0.000000e+00> : vector<16x16xf32>
      %13 = vector.multi_reduction <add>, %10, %cst [0] : vector<4x16x16xf32> to vector<16x16xf32>
      %14 = arith.addf %12, %13 : vector<16x16xf32>
      %c0_10 = arith.constant 0 : index
      %c3_11 = arith.constant 3 : index
      %c3_12 = arith.constant 3 : index
      %15 = vector.load %arg5[%c0_10, %c3_11, %c3_12] : memref<2x44x22xf32, #tpu.memory_space<vmem>>, vector<1x16x16xf32>
      %16 = vector.shape_cast %15 : vector<1x16x16xf32> to vector<16x16xf32>
      %17 = vector.shape_cast %14 : vector<16x16xf32> to vector<1x16x16xf32>
      tpu.vector_store %arg5[%c0_10, %c3_11, %c3_12], %17 {strides = array<i32>} : memref<2x44x22xf32, #tpu.memory_space<vmem>>, vector<1x16x16xf32>,
      %c1 = arith.constant 1 : index
      %c3_13 = arith.constant 3 : index
      %c3_14 = arith.constant 3 : index
      %18 = vector.load %arg5[%c1, %c3_13, %c3_14] : memref<2x44x22xf32, #tpu.memory_space<vmem>>, vector<1x16x16xf32>
      %19 = vector.shape_cast %18 : vector<1x16x16xf32> to vector<16x16xf32>
      %cst_15 = arith.constant dense<0xFF800000> : vector<16x16xf32>
      %20 = vector.multi_reduction <maximumf>, %10, %cst_15 [0] : vector<4x16x16xf32> to vector<16x16xf32>
      %21 = arith.maximumf %19, %20 : vector<16x16xf32>
      %c1_16 = arith.constant 1 : index
      %c3_17 = arith.constant 3 : index
      %c3_18 = arith.constant 3 : index
      %22 = vector.load %arg5[%c1_16, %c3_17, %c3_18] : memref<2x44x22xf32, #tpu.memory_space<vmem>>, vector<1x16x16xf32>
      %23 = vector.shape_cast %22 : vector<1x16x16xf32> to vector<16x16xf32>
      %24 = vector.shape_cast %21 : vector<16x16xf32> to vector<1x16x16xf32>
      tpu.vector_store %arg5[%c1_16, %c3_17, %c3_18], %24 {strides = array<i32>} : memref<2x44x22xf32, #tpu.memory_space<vmem>>, vector<1x16x16xf32>,
      %c1_19 = arith.constant 1 : index
      %c0_20 = arith.constant 0 : index
      %c0_21 = arith.constant 0 : index
      %c0_22 = arith.constant 0 : index
      %25 = vector.load %arg2[%c1_19, %c0_20, %c0_21, %c0_22] : memref<2x4x16x16xf32, #tpu.memory_space<vmem>>, vector<1x4x16x16xf32>
      %26 = vector.shape_cast %25 : vector<1x4x16x16xf32> to vector<4x16x16xf32>
      %c0_23 = arith.constant 0 : index
      %c25 = arith.constant 25 : index
      %c3_24 = arith.constant 3 : index
      %27 = vector.load %arg5[%c0_23, %c25, %c3_24] : memref<2x44x22xf32, #tpu.memory_space<vmem>>, vector<1x16x16xf32>
      %28 = vector.shape_cast %27 : vector<1x16x16xf32> to vector<16x16xf32>
      %cst_25 = arith.constant dense<0.000000e+00> : vector<16x16xf32>
      %29 = vector.multi_reduction <add>, %26, %cst_25 [0] : vector<4x16x16xf32> to vector<16x16xf32>
      %30 = arith.addf %28, %29 : vector<16x16xf32>
      %c0_26 = arith.constant 0 : index
      %c25_27 = arith.constant 25 : index
      %c3_28 = arith.constant 3 : index
      %31 = vector.load %arg5[%c0_26, %c25_27, %c3_28] : memref<2x44x22xf32, #tpu.memory_space<vmem>>, vector<1x16x16xf32>
      %32 = vector.shape_cast %31 : vector<1x16x16xf32> to vector<16x16xf32>
      %33 = vector.shape_cast %30 : vector<16x16xf32> to vector<1x16x16xf32>
      tpu.vector_store %arg5[%c0_26, %c25_27, %c3_28], %33 {strides = array<i32>} : memref<2x44x22xf32, #tpu.memory_space<vmem>>, vector<1x16x16xf32>,
      %c1_29 = arith.constant 1 : index
      %c25_30 = arith.constant 25 : index
      %c3_31 = arith.constant 3 : index
      %34 = vector.load %arg5[%c1_29, %c25_30, %c3_31] : memref<2x44x22xf32, #tpu.memory_space<vmem>>, vector<1x16x16xf32>
      %35 = vector.shape_cast %34 : vector<1x16x16xf32> to vector<16x16xf32>
      %cst_32 = arith.constant dense<0xFF800000> : vector<16x16xf32>
      %36 = vector.multi_reduction <maximumf>, %26, %cst_32 [0] : vector<4x16x16xf32> to vector<16x16xf32>
      %37 = arith.maximumf %35, %36 : vector<16x16xf32>
      %c1_33 = arith.constant 1 : index
      %c25_34 = arith.constant 25 : index
      %c3_35 = arith.constant 3 : index
      %38 = vector.load %arg5[%c1_33, %c25_34, %c3_35] : memref<2x44x22xf32, #tpu.memory_space<vmem>>, vector<1x16x16xf32>
      %39 = vector.shape_cast %38 : vector<1x16x16xf32> to vector<16x16xf32>
      %40 = vector.shape_cast %37 : vector<16x16xf32> to vector<1x16x16xf32>
      tpu.vector_store %arg5[%c1_33, %c25_34, %c3_35], %40 {strides = array<i32>} : memref<2x44x22xf32, #tpu.memory_space<vmem>>, vector<1x16x16xf32>,
    } else {
    }
    %c0_i32_3 = arith.constant 0 : i32
    %6 = arith.cmpi eq, %arg1, %c0_i32_3 : i32
    %7 = arith.extui %6 : i1 to i32
    %c0_i32_4 = arith.constant 0 : i32
    %8 = arith.cmpi ne, %7, %c0_i32_4 : i32
    scf.if %8 {
      %c0 = arith.constant 0 : index
      %c0_5 = arith.constant 0 : index
      %c0_6 = arith.constant 0 : index
      %9 = vector.load %arg5[%c0, %c0_5, %c0_6] : memref<2x44x22xf32, #tpu.memory_space<vmem>>, vector<1x44x22xf32>
      %10 = vector.shape_cast %9 : vector<1x44x22xf32> to vector<44x22xf32>
      %cst = arith.constant 2.500000e-01 : f32
      %11 = vector.broadcast %cst : f32 to vector<44x22xf32>
      %12 = arith.mulf %10, %11 : vector<44x22xf32>
      %c0_7 = arith.constant 0 : index
      %c0_8 = arith.constant 0 : index
      %c0_9 = arith.constant 0 : index
      %13 = vector.load %arg5[%c0_7, %c0_8, %c0_9] : memref<2x44x22xf32, #tpu.memory_space<vmem>>, vector<1x44x22xf32>
      %14 = vector.shape_cast %13 : vector<1x44x22xf32> to vector<44x22xf32>
      %15 = vector.shape_cast %12 : vector<44x22xf32> to vector<1x44x22xf32>
      tpu.vector_store %arg5[%c0_7, %c0_8, %c0_9], %15 {strides = array<i32>} : memref<2x44x22xf32, #tpu.memory_space<vmem>>, vector<1x44x22xf32>,
      %c0_10 = arith.constant 0 : index
      %c0_11 = arith.constant 0 : index
      %c0_12 = arith.constant 0 : index
      %16 = vector.load %arg5[%c0_10, %c0_11, %c0_12] : memref<2x44x22xf32, #tpu.memory_space<vmem>>, vector<1x44x16xf32>
      %17 = vector.shape_cast %16 : vector<1x44x16xf32> to vector<44x16xf32>
      %c0_13 = arith.constant 0 : index
      %c0_14 = arith.constant 0 : index
      %c0_15 = arith.constant 0 : index
      %c0_16 = arith.constant 0 : index
      %18 = vector.load %arg6[%c0_13, %c0_14, %c0_15, %c0_16] : memref<2x7x44x16xf32, #tpu.memory_space<vmem>>, vector<1x1x44x16xf32>
      %19 = vector.shape_cast %18 : vector<1x1x44x16xf32> to vector<44x16xf32>
      %20 = vector.shape_cast %17 : vector<44x16xf32> to vector<1x1x44x16xf32>
      tpu.vector_store %arg6[%c0_13, %c0_14, %c0_15, %c0_16], %20 {strides = array<i32>} : memref<2x7x44x16xf32, #tpu.memory_space<vmem>>, vector<1x1x44x16xf32>,
      %c0_17 = arith.constant 0 : index
      %c0_18 = arith.constant 0 : index
      %c1 = arith.constant 1 : index
      %21 = vector.load %arg5[%c0_17, %c0_18, %c1] : memref<2x44x22xf32, #tpu.memory_space<vmem>>, vector<1x44x16xf32>
      %22 = vector.shape_cast %21 : vector<1x44x16xf32> to vector<44x16xf32>
      %c0_19 = arith.constant 0 : index
      %c1_20 = arith.constant 1 : index
      %c0_21 = arith.constant 0 : index
      %c0_22 = arith.constant 0 : index
      %23 = vector.load %arg6[%c0_19, %c1_20, %c0_21, %c0_22] : memref<2x7x44x16xf32, #tpu.memory_space<vmem>>, vector<1x1x44x16xf32>
      %24 = vector.shape_cast %23 : vector<1x1x44x16xf32> to vector<44x16xf32>
      %25 = vector.shape_cast %22 : vector<44x16xf32> to vector<1x1x44x16xf32>
      tpu.vector_store %arg6[%c0_19, %c1_20, %c0_21, %c0_22], %25 {strides = array<i32>} : memref<2x7x44x16xf32, #tpu.memory_space<vmem>>, vector<1x1x44x16xf32>,
      %c0_23 = arith.constant 0 : index
      %c0_24 = arith.constant 0 : index
      %c2 = arith.constant 2 : index
      %26 = vector.load %arg5[%c0_23, %c0_24, %c2] : memref<2x44x22xf32, #tpu.memory_space<vmem>>, vector<1x44x16xf32>
      %27 = vector.shape_cast %26 : vector<1x44x16xf32> to vector<44x16xf32>
      %c0_25 = arith.constant 0 : index
      %c2_26 = arith.constant 2 : index
      %c0_27 = arith.constant 0 : index
      %c0_28 = arith.constant 0 : index
      %28 = vector.load %arg6[%c0_25, %c2_26, %c0_27, %c0_28] : memref<2x7x44x16xf32, #tpu.memory_space<vmem>>, vector<1x1x44x16xf32>
      %29 = vector.shape_cast %28 : vector<1x1x44x16xf32> to vector<44x16xf32>
      %30 = vector.shape_cast %27 : vector<44x16xf32> to vector<1x1x44x16xf32>
      tpu.vector_store %arg6[%c0_25, %c2_26, %c0_27, %c0_28], %30 {strides = array<i32>} : memref<2x7x44x16xf32, #tpu.memory_space<vmem>>, vector<1x1x44x16xf32>,
      %c0_29 = arith.constant 0 : index
      %c0_30 = arith.constant 0 : index
      %c3 = arith.constant 3 : index
      %31 = vector.load %arg5[%c0_29, %c0_30, %c3] : memref<2x44x22xf32, #tpu.memory_space<vmem>>, vector<1x44x16xf32>
      %32 = vector.shape_cast %31 : vector<1x44x16xf32> to vector<44x16xf32>
      %c0_31 = arith.constant 0 : index
      %c3_32 = arith.constant 3 : index
      %c0_33 = arith.constant 0 : index
      %c0_34 = arith.constant 0 : index
      %33 = vector.load %arg6[%c0_31, %c3_32, %c0_33, %c0_34] : memref<2x7x44x16xf32, #tpu.memory_space<vmem>>, vector<1x1x44x16xf32>
      %34 = vector.shape_cast %33 : vector<1x1x44x16xf32> to vector<44x16xf32>
      %35 = vector.shape_cast %32 : vector<44x16xf32> to vector<1x1x44x16xf32>
      tpu.vector_store %arg6[%c0_31, %c3_32, %c0_33, %c0_34], %35 {strides = array<i32>} : memref<2x7x44x16xf32, #tpu.memory_space<vmem>>, vector<1x1x44x16xf32>,
      %c0_35 = arith.constant 0 : index
      %c0_36 = arith.constant 0 : index
      %c4 = arith.constant 4 : index
      %36 = vector.load %arg5[%c0_35, %c0_36, %c4] : memref<2x44x22xf32, #tpu.memory_space<vmem>>, vector<1x44x16xf32>
      %37 = vector.shape_cast %36 : vector<1x44x16xf32> to vector<44x16xf32>
      %c0_37 = arith.constant 0 : index
      %c4_38 = arith.constant 4 : index
      %c0_39 = arith.constant 0 : index
      %c0_40 = arith.constant 0 : index
      %38 = vector.load %arg6[%c0_37, %c4_38, %c0_39, %c0_40] : memref<2x7x44x16xf32, #tpu.memory_space<vmem>>, vector<1x1x44x16xf32>
      %39 = vector.shape_cast %38 : vector<1x1x44x16xf32> to vector<44x16xf32>
      %40 = vector.shape_cast %37 : vector<44x16xf32> to vector<1x1x44x16xf32>
      tpu.vector_store %arg6[%c0_37, %c4_38, %c0_39, %c0_40], %40 {strides = array<i32>} : memref<2x7x44x16xf32, #tpu.memory_space<vmem>>, vector<1x1x44x16xf32>,
      %c0_41 = arith.constant 0 : index
      %c0_42 = arith.constant 0 : index
      %c5 = arith.constant 5 : index
      %41 = vector.load %arg5[%c0_41, %c0_42, %c5] : memref<2x44x22xf32, #tpu.memory_space<vmem>>, vector<1x44x16xf32>
      %42 = vector.shape_cast %41 : vector<1x44x16xf32> to vector<44x16xf32>
      %c0_43 = arith.constant 0 : index
      %c5_44 = arith.constant 5 : index
      %c0_45 = arith.constant 0 : index
      %c0_46 = arith.constant 0 : index
      %43 = vector.load %arg6[%c0_43, %c5_44, %c0_45, %c0_46] : memref<2x7x44x16xf32, #tpu.memory_space<vmem>>, vector<1x1x44x16xf32>
      %44 = vector.shape_cast %43 : vector<1x1x44x16xf32> to vector<44x16xf32>
      %45 = vector.shape_cast %42 : vector<44x16xf32> to vector<1x1x44x16xf32>
      tpu.vector_store %arg6[%c0_43, %c5_44, %c0_45, %c0_46], %45 {strides = array<i32>} : memref<2x7x44x16xf32, #tpu.memory_space<vmem>>, vector<1x1x44x16xf32>,
      %c0_47 = arith.constant 0 : index
      %c0_48 = arith.constant 0 : index
      %c6 = arith.constant 6 : index
      %46 = vector.load %arg5[%c0_47, %c0_48, %c6] : memref<2x44x22xf32, #tpu.memory_space<vmem>>, vector<1x44x16xf32>
      %47 = vector.shape_cast %46 : vector<1x44x16xf32> to vector<44x16xf32>
      %c0_49 = arith.constant 0 : index
      %c6_50 = arith.constant 6 : index
      %c0_51 = arith.constant 0 : index
      %c0_52 = arith.constant 0 : index
      %48 = vector.load %arg6[%c0_49, %c6_50, %c0_51, %c0_52] : memref<2x7x44x16xf32, #tpu.memory_space<vmem>>, vector<1x1x44x16xf32>
      %49 = vector.shape_cast %48 : vector<1x1x44x16xf32> to vector<44x16xf32>
      %50 = vector.shape_cast %47 : vector<44x16xf32> to vector<1x1x44x16xf32>
      tpu.vector_store %arg6[%c0_49, %c6_50, %c0_51, %c0_52], %50 {strides = array<i32>} : memref<2x7x44x16xf32, #tpu.memory_space<vmem>>, vector<1x1x44x16xf32>,
      %c1_53 = arith.constant 1 : index
      %c0_54 = arith.constant 0 : index
      %c0_55 = arith.constant 0 : index
      %51 = vector.load %arg5[%c1_53, %c0_54, %c0_55] : memref<2x44x22xf32, #tpu.memory_space<vmem>>, vector<1x44x16xf32>
      %52 = vector.shape_cast %51 : vector<1x44x16xf32> to vector<44x16xf32>
      %c1_56 = arith.constant 1 : index
      %c0_57 = arith.constant 0 : index
      %c0_58 = arith.constant 0 : index
      %c0_59 = arith.constant 0 : index
      %53 = vector.load %arg6[%c1_56, %c0_57, %c0_58, %c0_59] : memref<2x7x44x16xf32, #tpu.memory_space<vmem>>, vector<1x1x44x16xf32>
      %54 = vector.shape_cast %53 : vector<1x1x44x16xf32> to vector<44x16xf32>
      %55 = vector.shape_cast %52 : vector<44x16xf32> to vector<1x1x44x16xf32>
      tpu.vector_store %arg6[%c1_56, %c0_57, %c0_58, %c0_59], %55 {strides = array<i32>} : memref<2x7x44x16xf32, #tpu.memory_space<vmem>>, vector<1x1x44x16xf32>,
      %c1_60 = arith.constant 1 : index
      %c0_61 = arith.constant 0 : index
      %c1_62 = arith.constant 1 : index
      %56 = vector.load %arg5[%c1_60, %c0_61, %c1_62] : memref<2x44x22xf32, #tpu.memory_space<vmem>>, vector<1x44x16xf32>
      %57 = vector.shape_cast %56 : vector<1x44x16xf32> to vector<44x16xf32>
      %c1_63 = arith.constant 1 : index
      %c1_64 = arith.constant 1 : index
      %c0_65 = arith.constant 0 : index
      %c0_66 = arith.constant 0 : index
      %58 = vector.load %arg6[%c1_63, %c1_64, %c0_65, %c0_66] : memref<2x7x44x16xf32, #tpu.memory_space<vmem>>, vector<1x1x44x16xf32>
      %59 = vector.shape_cast %58 : vector<1x1x44x16xf32> to vector<44x16xf32>
      %60 = vector.shape_cast %57 : vector<44x16xf32> to vector<1x1x44x16xf32>
      tpu.vector_store %arg6[%c1_63, %c1_64, %c0_65, %c0_66], %60 {strides = array<i32>} : memref<2x7x44x16xf32, #tpu.memory_space<vmem>>, vector<1x1x44x16xf32>,
      %c1_67 = arith.constant 1 : index
      %c0_68 = arith.constant 0 : index
      %c2_69 = arith.constant 2 : index
      %61 = vector.load %arg5[%c1_67, %c0_68, %c2_69] : memref<2x44x22xf32, #tpu.memory_space<vmem>>, vector<1x44x16xf32>
      %62 = vector.shape_cast %61 : vector<1x44x16xf32> to vector<44x16xf32>
      %c1_70 = arith.constant 1 : index
      %c2_71 = arith.constant 2 : index
      %c0_72 = arith.constant 0 : index
      %c0_73 = arith.constant 0 : index
      %63 = vector.load %arg6[%c1_70, %c2_71, %c0_72, %c0_73] : memref<2x7x44x16xf32, #tpu.memory_space<vmem>>, vector<1x1x44x16xf32>
      %64 = vector.shape_cast %63 : vector<1x1x44x16xf32> to vector<44x16xf32>
      %65 = vector.shape_cast %62 : vector<44x16xf32> to vector<1x1x44x16xf32>
      tpu.vector_store %arg6[%c1_70, %c2_71, %c0_72, %c0_73], %65 {strides = array<i32>} : memref<2x7x44x16xf32, #tpu.memory_space<vmem>>, vector<1x1x44x16xf32>,
      %c1_74 = arith.constant 1 : index
      %c0_75 = arith.constant 0 : index
      %c3_76 = arith.constant 3 : index
      %66 = vector.load %arg5[%c1_74, %c0_75, %c3_76] : memref<2x44x22xf32, #tpu.memory_space<vmem>>, vector<1x44x16xf32>
      %67 = vector.shape_cast %66 : vector<1x44x16xf32> to vector<44x16xf32>
      %c1_77 = arith.constant 1 : index
      %c3_78 = arith.constant 3 : index
      %c0_79 = arith.constant 0 : index
      %c0_80 = arith.constant 0 : index
      %68 = vector.load %arg6[%c1_77, %c3_78, %c0_79, %c0_80] : memref<2x7x44x16xf32, #tpu.memory_space<vmem>>, vector<1x1x44x16xf32>
      %69 = vector.shape_cast %68 : vector<1x1x44x16xf32> to vector<44x16xf32>
      %70 = vector.shape_cast %67 : vector<44x16xf32> to vector<1x1x44x16xf32>
      tpu.vector_store %arg6[%c1_77, %c3_78, %c0_79, %c0_80], %70 {strides = array<i32>} : memref<2x7x44x16xf32, #tpu.memory_space<vmem>>, vector<1x1x44x16xf32>,
      %c1_81 = arith.constant 1 : index
      %c0_82 = arith.constant 0 : index
      %c4_83 = arith.constant 4 : index
      %71 = vector.load %arg5[%c1_81, %c0_82, %c4_83] : memref<2x44x22xf32, #tpu.memory_space<vmem>>, vector<1x44x16xf32>
      %72 = vector.shape_cast %71 : vector<1x44x16xf32> to vector<44x16xf32>
      %c1_84 = arith.constant 1 : index
      %c4_85 = arith.constant 4 : index
      %c0_86 = arith.constant 0 : index
      %c0_87 = arith.constant 0 : index
      %73 = vector.load %arg6[%c1_84, %c4_85, %c0_86, %c0_87] : memref<2x7x44x16xf32, #tpu.memory_space<vmem>>, vector<1x1x44x16xf32>
      %74 = vector.shape_cast %73 : vector<1x1x44x16xf32> to vector<44x16xf32>
      %75 = vector.shape_cast %72 : vector<44x16xf32> to vector<1x1x44x16xf32>
      tpu.vector_store %arg6[%c1_84, %c4_85, %c0_86, %c0_87], %75 {strides = array<i32>} : memref<2x7x44x16xf32, #tpu.memory_space<vmem>>, vector<1x1x44x16xf32>,
      %c1_88 = arith.constant 1 : index
      %c0_89 = arith.constant 0 : index
      %c5_90 = arith.constant 5 : index
      %76 = vector.load %arg5[%c1_88, %c0_89, %c5_90] : memref<2x44x22xf32, #tpu.memory_space<vmem>>, vector<1x44x16xf32>
      %77 = vector.shape_cast %76 : vector<1x44x16xf32> to vector<44x16xf32>
      %c1_91 = arith.constant 1 : index
      %c5_92 = arith.constant 5 : index
      %c0_93 = arith.constant 0 : index
      %c0_94 = arith.constant 0 : index
      %78 = vector.load %arg6[%c1_91, %c5_92, %c0_93, %c0_94] : memref<2x7x44x16xf32, #tpu.memory_space<vmem>>, vector<1x1x44x16xf32>
      %79 = vector.shape_cast %78 : vector<1x1x44x16xf32> to vector<44x16xf32>
      %80 = vector.shape_cast %77 : vector<44x16xf32> to vector<1x1x44x16xf32>
      tpu.vector_store %arg6[%c1_91, %c5_92, %c0_93, %c0_94], %80 {strides = array<i32>} : memref<2x7x44x16xf32, #tpu.memory_space<vmem>>, vector<1x1x44x16xf32>,
      %c1_95 = arith.constant 1 : index
      %c0_96 = arith.constant 0 : index
      %c6_97 = arith.constant 6 : index
      %81 = vector.load %arg5[%c1_95, %c0_96, %c6_97] : memref<2x44x22xf32, #tpu.memory_space<vmem>>, vector<1x44x16xf32>
      %82 = vector.shape_cast %81 : vector<1x44x16xf32> to vector<44x16xf32>
      %c1_98 = arith.constant 1 : index
      %c6_99 = arith.constant 6 : index
      %c0_100 = arith.constant 0 : index
      %c0_101 = arith.constant 0 : index
      %83 = vector.load %arg6[%c1_98, %c6_99, %c0_100, %c0_101] : memref<2x7x44x16xf32, #tpu.memory_space<vmem>>, vector<1x1x44x16xf32>
      %84 = vector.shape_cast %83 : vector<1x1x44x16xf32> to vector<44x16xf32>
      %85 = vector.shape_cast %82 : vector<44x16xf32> to vector<1x1x44x16xf32>
      tpu.vector_store %arg6[%c1_98, %c6_99, %c0_100, %c0_101], %85 {strides = array<i32>} : memref<2x7x44x16xf32, #tpu.memory_space<vmem>>, vector<1x1x44x16xf32>,
      %cst_102 = arith.constant 0.000000e+00 : f32
      %86 = vector.broadcast %cst_102 : f32 to vector<38x16xf32>
      %c0_103 = arith.constant 0 : index
      %c0_104 = arith.constant 0 : index
      %87 = vector.load %arg7[%c0_103, %c0_104] : memref<38x16xf32, #tpu.memory_space<vmem>>, vector<38x16xf32>
      tpu.vector_store %arg7[%c0_103, %c0_104], %86 {strides = array<i32>} : memref<38x16xf32, #tpu.memory_space<vmem>>, vector<38x16xf32>,
      %c0_i32_105 = arith.constant 0 : i32
      %c7_i32 = arith.constant 7 : i32
      %88 = arith.addi %c0_i32_105, %c7_i32 : i32
      %c1_i32 = arith.constant 1 : i32
      scf.for %arg8 = %c0_i32_105 to %88 step %c1_i32  : i32 {
        %c0_118 = arith.constant 0 : index
        %c0_119 = arith.constant 0 : index
        %107 = vector.load %arg7[%c0_118, %c0_119] : memref<38x16xf32, #tpu.memory_space<vmem>>, vector<38x16xf32>
        %c7_i32_120 = arith.constant 7 : i32
        %108 = arith.muli %arg8, %c7_i32_120 : i32
        %c0_i32_121 = arith.constant 0 : i32
        %109 = arith.addi %c0_i32_121, %108 : i32
        %c0_i32_122 = arith.constant 0 : i32
        %110 = arith.addi %109, %c0_i32_122 : i32
        %111 = arith.index_cast %110 : i32 to index
        %112 = memref.load %arg3[%111] : memref<98xf32, #tpu.memory_space<smem>>
        %c0_123 = arith.constant 0 : index
        %c0_124 = arith.constant 0 : index
        %113 = arith.index_cast %arg8 : i32 to index
        %c0_125 = arith.constant 0 : index
        %114 = vector.load %arg6[%c0_123, %c0_124, %113, %c0_125] : memref<2x7x44x16xf32, #tpu.memory_space<vmem>>, vector<1x1x38x16xf32>
        %115 = vector.shape_cast %114 : vector<1x1x38x16xf32> to vector<38x16xf32>
        %116 = vector.broadcast %112 : f32 to vector<38x16xf32>
        %117 = arith.mulf %115, %116 : vector<38x16xf32>
        %118 = arith.addf %107, %117 : vector<38x16xf32>
        %c7_i32_126 = arith.constant 7 : i32
        %119 = arith.muli %arg8, %c7_i32_126 : i32
        %c0_i32_127 = arith.constant 0 : i32
        %120 = arith.addi %c0_i32_127, %119 : i32
        %c1_i32_128 = arith.constant 1 : i32
        %121 = arith.addi %120, %c1_i32_128 : i32
        %122 = arith.index_cast %121 : i32 to index
        %123 = memref.load %arg3[%122] : memref<98xf32, #tpu.memory_space<smem>>
        %c0_129 = arith.constant 0 : index
        %c1_130 = arith.constant 1 : index
        %124 = arith.index_cast %arg8 : i32 to index
        %c0_131 = arith.constant 0 : index
        %125 = vector.load %arg6[%c0_129, %c1_130, %124, %c0_131] : memref<2x7x44x16xf32, #tpu.memory_space<vmem>>, vector<1x1x38x16xf32>
        %126 = vector.shape_cast %125 : vector<1x1x38x16xf32> to vector<38x16xf32>
        %127 = vector.broadcast %123 : f32 to vector<38x16xf32>
        %128 = arith.mulf %126, %127 : vector<38x16xf32>
        %129 = arith.addf %118, %128 : vector<38x16xf32>
        %c7_i32_132 = arith.constant 7 : i32
        %130 = arith.muli %arg8, %c7_i32_132 : i32
        %c0_i32_133 = arith.constant 0 : i32
        %131 = arith.addi %c0_i32_133, %130 : i32
        %c2_i32 = arith.constant 2 : i32
        %132 = arith.addi %131, %c2_i32 : i32
        %133 = arith.index_cast %132 : i32 to index
        %134 = memref.load %arg3[%133] : memref<98xf32, #tpu.memory_space<smem>>
        %c0_134 = arith.constant 0 : index
        %c2_135 = arith.constant 2 : index
        %135 = arith.index_cast %arg8 : i32 to index
        %c0_136 = arith.constant 0 : index
        %136 = vector.load %arg6[%c0_134, %c2_135, %135, %c0_136] : memref<2x7x44x16xf32, #tpu.memory_space<vmem>>, vector<1x1x38x16xf32>
        %137 = vector.shape_cast %136 : vector<1x1x38x16xf32> to vector<38x16xf32>
        %138 = vector.broadcast %134 : f32 to vector<38x16xf32>
        %139 = arith.mulf %137, %138 : vector<38x16xf32>
        %140 = arith.addf %129, %139 : vector<38x16xf32>
        %c7_i32_137 = arith.constant 7 : i32
        %141 = arith.muli %arg8, %c7_i32_137 : i32
        %c0_i32_138 = arith.constant 0 : i32
        %142 = arith.addi %c0_i32_138, %141 : i32
        %c3_i32 = arith.constant 3 : i32
        %143 = arith.addi %142, %c3_i32 : i32
        %144 = arith.index_cast %143 : i32 to index
        %145 = memref.load %arg3[%144] : memref<98xf32, #tpu.memory_space<smem>>
        %c0_139 = arith.constant 0 : index
        %c3_140 = arith.constant 3 : index
        %146 = arith.index_cast %arg8 : i32 to index
        %c0_141 = arith.constant 0 : index
        %147 = vector.load %arg6[%c0_139, %c3_140, %146, %c0_141] : memref<2x7x44x16xf32, #tpu.memory_space<vmem>>, vector<1x1x38x16xf32>
        %148 = vector.shape_cast %147 : vector<1x1x38x16xf32> to vector<38x16xf32>
        %149 = vector.broadcast %145 : f32 to vector<38x16xf32>
        %150 = arith.mulf %148, %149 : vector<38x16xf32>
        %151 = arith.addf %140, %150 : vector<38x16xf32>
        %c7_i32_142 = arith.constant 7 : i32
        %152 = arith.muli %arg8, %c7_i32_142 : i32
        %c0_i32_143 = arith.constant 0 : i32
        %153 = arith.addi %c0_i32_143, %152 : i32
        %c4_i32 = arith.constant 4 : i32
        %154 = arith.addi %153, %c4_i32 : i32
        %155 = arith.index_cast %154 : i32 to index
        %156 = memref.load %arg3[%155] : memref<98xf32, #tpu.memory_space<smem>>
        %c0_144 = arith.constant 0 : index
        %c4_145 = arith.constant 4 : index
        %157 = arith.index_cast %arg8 : i32 to index
        %c0_146 = arith.constant 0 : index
        %158 = vector.load %arg6[%c0_144, %c4_145, %157, %c0_146] : memref<2x7x44x16xf32, #tpu.memory_space<vmem>>, vector<1x1x38x16xf32>
        %159 = vector.shape_cast %158 : vector<1x1x38x16xf32> to vector<38x16xf32>
        %160 = vector.broadcast %156 : f32 to vector<38x16xf32>
        %161 = arith.mulf %159, %160 : vector<38x16xf32>
        %162 = arith.addf %151, %161 : vector<38x16xf32>
        %c7_i32_147 = arith.constant 7 : i32
        %163 = arith.muli %arg8, %c7_i32_147 : i32
        %c0_i32_148 = arith.constant 0 : i32
        %164 = arith.addi %c0_i32_148, %163 : i32
        %c5_i32 = arith.constant 5 : i32
        %165 = arith.addi %164, %c5_i32 : i32
        %166 = arith.index_cast %165 : i32 to index
        %167 = memref.load %arg3[%166] : memref<98xf32, #tpu.memory_space<smem>>
        %c0_149 = arith.constant 0 : index
        %c5_150 = arith.constant 5 : index
        %168 = arith.index_cast %arg8 : i32 to index
        %c0_151 = arith.constant 0 : index
        %169 = vector.load %arg6[%c0_149, %c5_150, %168, %c0_151] : memref<2x7x44x16xf32, #tpu.memory_space<vmem>>, vector<1x1x38x16xf32>
        %170 = vector.shape_cast %169 : vector<1x1x38x16xf32> to vector<38x16xf32>
        %171 = vector.broadcast %167 : f32 to vector<38x16xf32>
        %172 = arith.mulf %170, %171 : vector<38x16xf32>
        %173 = arith.addf %162, %172 : vector<38x16xf32>
        %c7_i32_152 = arith.constant 7 : i32
        %174 = arith.muli %arg8, %c7_i32_152 : i32
        %c0_i32_153 = arith.constant 0 : i32
        %175 = arith.addi %c0_i32_153, %174 : i32
        %c6_i32 = arith.constant 6 : i32
        %176 = arith.addi %175, %c6_i32 : i32
        %177 = arith.index_cast %176 : i32 to index
        %178 = memref.load %arg3[%177] : memref<98xf32, #tpu.memory_space<smem>>
        %c0_154 = arith.constant 0 : index
        %c6_155 = arith.constant 6 : index
        %179 = arith.index_cast %arg8 : i32 to index
        %c0_156 = arith.constant 0 : index
        %180 = vector.load %arg6[%c0_154, %c6_155, %179, %c0_156] : memref<2x7x44x16xf32, #tpu.memory_space<vmem>>, vector<1x1x38x16xf32>
        %181 = vector.shape_cast %180 : vector<1x1x38x16xf32> to vector<38x16xf32>
        %182 = vector.broadcast %178 : f32 to vector<38x16xf32>
        %183 = arith.mulf %181, %182 : vector<38x16xf32>
        %184 = arith.addf %173, %183 : vector<38x16xf32>
        %c7_i32_157 = arith.constant 7 : i32
        %185 = arith.muli %arg8, %c7_i32_157 : i32
        %c49_i32 = arith.constant 49 : i32
        %186 = arith.addi %c49_i32, %185 : i32
        %c0_i32_158 = arith.constant 0 : i32
        %187 = arith.addi %186, %c0_i32_158 : i32
        %188 = arith.index_cast %187 : i32 to index
        %189 = memref.load %arg3[%188] : memref<98xf32, #tpu.memory_space<smem>>
        %c1_159 = arith.constant 1 : index
        %c0_160 = arith.constant 0 : index
        %190 = arith.index_cast %arg8 : i32 to index
        %c0_161 = arith.constant 0 : index
        %191 = vector.load %arg6[%c1_159, %c0_160, %190, %c0_161] : memref<2x7x44x16xf32, #tpu.memory_space<vmem>>, vector<1x1x38x16xf32>
        %192 = vector.shape_cast %191 : vector<1x1x38x16xf32> to vector<38x16xf32>
        %193 = vector.broadcast %189 : f32 to vector<38x16xf32>
        %194 = arith.mulf %192, %193 : vector<38x16xf32>
        %195 = arith.addf %184, %194 : vector<38x16xf32>
        %c7_i32_162 = arith.constant 7 : i32
        %196 = arith.muli %arg8, %c7_i32_162 : i32
        %c49_i32_163 = arith.constant 49 : i32
        %197 = arith.addi %c49_i32_163, %196 : i32
        %c1_i32_164 = arith.constant 1 : i32
        %198 = arith.addi %197, %c1_i32_164 : i32
        %199 = arith.index_cast %198 : i32 to index
        %200 = memref.load %arg3[%199] : memref<98xf32, #tpu.memory_space<smem>>
        %c1_165 = arith.constant 1 : index
        %c1_166 = arith.constant 1 : index
        %201 = arith.index_cast %arg8 : i32 to index
        %c0_167 = arith.constant 0 : index
        %202 = vector.load %arg6[%c1_165, %c1_166, %201, %c0_167] : memref<2x7x44x16xf32, #tpu.memory_space<vmem>>, vector<1x1x38x16xf32>
        %203 = vector.shape_cast %202 : vector<1x1x38x16xf32> to vector<38x16xf32>
        %204 = vector.broadcast %200 : f32 to vector<38x16xf32>
        %205 = arith.mulf %203, %204 : vector<38x16xf32>
        %206 = arith.addf %195, %205 : vector<38x16xf32>
        %c7_i32_168 = arith.constant 7 : i32
        %207 = arith.muli %arg8, %c7_i32_168 : i32
        %c49_i32_169 = arith.constant 49 : i32
        %208 = arith.addi %c49_i32_169, %207 : i32
        %c2_i32_170 = arith.constant 2 : i32
        %209 = arith.addi %208, %c2_i32_170 : i32
        %210 = arith.index_cast %209 : i32 to index
        %211 = memref.load %arg3[%210] : memref<98xf32, #tpu.memory_space<smem>>
        %c1_171 = arith.constant 1 : index
        %c2_172 = arith.constant 2 : index
        %212 = arith.index_cast %arg8 : i32 to index
        %c0_173 = arith.constant 0 : index
        %213 = vector.load %arg6[%c1_171, %c2_172, %212, %c0_173] : memref<2x7x44x16xf32, #tpu.memory_space<vmem>>, vector<1x1x38x16xf32>
        %214 = vector.shape_cast %213 : vector<1x1x38x16xf32> to vector<38x16xf32>
        %215 = vector.broadcast %211 : f32 to vector<38x16xf32>
        %216 = arith.mulf %214, %215 : vector<38x16xf32>
        %217 = arith.addf %206, %216 : vector<38x16xf32>
        %c7_i32_174 = arith.constant 7 : i32
        %218 = arith.muli %arg8, %c7_i32_174 : i32
        %c49_i32_175 = arith.constant 49 : i32
        %219 = arith.addi %c49_i32_175, %218 : i32
        %c3_i32_176 = arith.constant 3 : i32
        %220 = arith.addi %219, %c3_i32_176 : i32
        %221 = arith.index_cast %220 : i32 to index
        %222 = memref.load %arg3[%221] : memref<98xf32, #tpu.memory_space<smem>>
        %c1_177 = arith.constant 1 : index
        %c3_178 = arith.constant 3 : index
        %223 = arith.index_cast %arg8 : i32 to index
        %c0_179 = arith.constant 0 : index
        %224 = vector.load %arg6[%c1_177, %c3_178, %223, %c0_179] : memref<2x7x44x16xf32, #tpu.memory_space<vmem>>, vector<1x1x38x16xf32>
        %225 = vector.shape_cast %224 : vector<1x1x38x16xf32> to vector<38x16xf32>
        %226 = vector.broadcast %222 : f32 to vector<38x16xf32>
        %227 = arith.mulf %225, %226 : vector<38x16xf32>
        %228 = arith.addf %217, %227 : vector<38x16xf32>
        %c7_i32_180 = arith.constant 7 : i32
        %229 = arith.muli %arg8, %c7_i32_180 : i32
        %c49_i32_181 = arith.constant 49 : i32
        %230 = arith.addi %c49_i32_181, %229 : i32
        %c4_i32_182 = arith.constant 4 : i32
        %231 = arith.addi %230, %c4_i32_182 : i32
        %232 = arith.index_cast %231 : i32 to index
        %233 = memref.load %arg3[%232] : memref<98xf32, #tpu.memory_space<smem>>
        %c1_183 = arith.constant 1 : index
        %c4_184 = arith.constant 4 : index
        %234 = arith.index_cast %arg8 : i32 to index
        %c0_185 = arith.constant 0 : index
        %235 = vector.load %arg6[%c1_183, %c4_184, %234, %c0_185] : memref<2x7x44x16xf32, #tpu.memory_space<vmem>>, vector<1x1x38x16xf32>
        %236 = vector.shape_cast %235 : vector<1x1x38x16xf32> to vector<38x16xf32>
        %237 = vector.broadcast %233 : f32 to vector<38x16xf32>
        %238 = arith.mulf %236, %237 : vector<38x16xf32>
        %239 = arith.addf %228, %238 : vector<38x16xf32>
        %c7_i32_186 = arith.constant 7 : i32
        %240 = arith.muli %arg8, %c7_i32_186 : i32
        %c49_i32_187 = arith.constant 49 : i32
        %241 = arith.addi %c49_i32_187, %240 : i32
        %c5_i32_188 = arith.constant 5 : i32
        %242 = arith.addi %241, %c5_i32_188 : i32
        %243 = arith.index_cast %242 : i32 to index
        %244 = memref.load %arg3[%243] : memref<98xf32, #tpu.memory_space<smem>>
        %c1_189 = arith.constant 1 : index
        %c5_190 = arith.constant 5 : index
        %245 = arith.index_cast %arg8 : i32 to index
        %c0_191 = arith.constant 0 : index
        %246 = vector.load %arg6[%c1_189, %c5_190, %245, %c0_191] : memref<2x7x44x16xf32, #tpu.memory_space<vmem>>, vector<1x1x38x16xf32>
        %247 = vector.shape_cast %246 : vector<1x1x38x16xf32> to vector<38x16xf32>
        %248 = vector.broadcast %244 : f32 to vector<38x16xf32>
        %249 = arith.mulf %247, %248 : vector<38x16xf32>
        %250 = arith.addf %239, %249 : vector<38x16xf32>
        %c7_i32_192 = arith.constant 7 : i32
        %251 = arith.muli %arg8, %c7_i32_192 : i32
        %c49_i32_193 = arith.constant 49 : i32
        %252 = arith.addi %c49_i32_193, %251 : i32
        %c6_i32_194 = arith.constant 6 : i32
        %253 = arith.addi %252, %c6_i32_194 : i32
        %254 = arith.index_cast %253 : i32 to index
        %255 = memref.load %arg3[%254] : memref<98xf32, #tpu.memory_space<smem>>
        %c1_195 = arith.constant 1 : index
        %c6_196 = arith.constant 6 : index
        %256 = arith.index_cast %arg8 : i32 to index
        %c0_197 = arith.constant 0 : index
        %257 = vector.load %arg6[%c1_195, %c6_196, %256, %c0_197] : memref<2x7x44x16xf32, #tpu.memory_space<vmem>>, vector<1x1x38x16xf32>
        %258 = vector.shape_cast %257 : vector<1x1x38x16xf32> to vector<38x16xf32>
        %259 = vector.broadcast %255 : f32 to vector<38x16xf32>
        %260 = arith.mulf %258, %259 : vector<38x16xf32>
        %261 = arith.addf %250, %260 : vector<38x16xf32>
        %c0_198 = arith.constant 0 : index
        %c0_199 = arith.constant 0 : index
        %262 = vector.load %arg7[%c0_198, %c0_199] : memref<38x16xf32, #tpu.memory_space<vmem>>, vector<38x16xf32>
        tpu.vector_store %arg7[%c0_198, %c0_199], %261 {strides = array<i32>} : memref<38x16xf32, #tpu.memory_space<vmem>>, vector<38x16xf32>,
      }
      %c7_i32_106 = arith.constant 7 : i32
      %c0_107 = arith.constant 0 : index
      %c0_108 = arith.constant 0 : index
      %89 = vector.load %arg7[%c0_107, %c0_108] : memref<38x16xf32, #tpu.memory_space<vmem>>, vector<16x16xf32>
      %90 = arith.negf %89 : vector<16x16xf32>
      %91 = math.exp %90 : vector<16x16xf32>
      %cst_109 = arith.constant 1.000000e+00 : f32
      %92 = vector.broadcast %cst_109 : f32 to vector<16x16xf32>
      %93 = arith.addf %92, %91 : vector<16x16xf32>
      %94 = arith.divf %92, %93 : vector<16x16xf32>
      %c0_110 = arith.constant 0 : index
      %c0_111 = arith.constant 0 : index
      %c0_112 = arith.constant 0 : index
      %95 = vector.load %arg4[%c0_110, %c0_111, %c0_112] : memref<2x16x16xf32, #tpu.memory_space<vmem>>, vector<1x16x16xf32>
      %96 = vector.shape_cast %95 : vector<1x16x16xf32> to vector<16x16xf32>
      %97 = vector.shape_cast %94 : vector<16x16xf32> to vector<1x16x16xf32>
      tpu.vector_store %arg4[%c0_110, %c0_111, %c0_112], %97 {strides = array<i32>} : memref<2x16x16xf32, #tpu.memory_space<vmem>>, vector<1x16x16xf32>,
      %c22 = arith.constant 22 : index
      %c0_113 = arith.constant 0 : index
      %98 = vector.load %arg7[%c22, %c0_113] : memref<38x16xf32, #tpu.memory_space<vmem>>, vector<16x16xf32>
      %99 = arith.negf %98 : vector<16x16xf32>
      %100 = math.exp %99 : vector<16x16xf32>
      %cst_114 = arith.constant 1.000000e+00 : f32
      %101 = vector.broadcast %cst_114 : f32 to vector<16x16xf32>
      %102 = arith.addf %101, %100 : vector<16x16xf32>
      %103 = arith.divf %101, %102 : vector<16x16xf32>
      %c1_115 = arith.constant 1 : index
      %c0_116 = arith.constant 0 : index
      %c0_117 = arith.constant 0 : index
      %104 = vector.load %arg4[%c1_115, %c0_116, %c0_117] : memref<2x16x16xf32, #tpu.memory_space<vmem>>, vector<1x16x16xf32>
      %105 = vector.shape_cast %104 : vector<1x16x16xf32> to vector<16x16xf32>
      %106 = vector.shape_cast %103 : vector<16x16xf32> to vector<1x16x16xf32>
      tpu.vector_store %arg4[%c1_115, %c0_116, %c0_117], %106 {strides = array<i32>} : memref<2x16x16xf32, #tpu.memory_space<vmem>>, vector<1x16x16xf32>,
    } else {
    }
    return
  }
  func.func @transform_0(%arg0: i32, %arg1: i32) -> (i32, i32, i32, i32) {
    %c0_i32 = arith.constant 0 : i32
    %c0_i32_0 = arith.constant 0 : i32
    %c0_i32_1 = arith.constant 0 : i32
    return %arg0, %arg1, %c0_i32, %c0_i32_0 : i32, i32, i32, i32
  }
  func.func @transform_1(%arg0: i32, %arg1: i32) -> i32 {
    %c0_i32 = arith.constant 0 : i32
    %c0_i32_0 = arith.constant 0 : i32
    return %c0_i32 : i32
  }
  func.func @transform_2(%arg0: i32, %arg1: i32) -> (i32, i32, i32) {
    %c0_i32 = arith.constant 0 : i32
    %c0_i32_0 = arith.constant 0 : i32
    %c0_i32_1 = arith.constant 0 : i32
    return %arg0, %c0_i32, %c0_i32_0 : i32, i32, i32
  }
}

</mosaic_0001>

<llo_original>
// kernel: tpu_custom_call.1
$region0: #{tpu_custom_call.1}
  #allocation0 [shape = 'u32[]', space=smem, size = 0x4, offset = 0x4, fixed_abs, tag = 'smem constant byte address 0x4 - core index']
  #allocation1 [shape = 'u32[144,128]{1,0:T(1,128)}', space=vmem, size = 0x12000, scoped, tag = 'internal scratch']
  #allocation2 [shape = 'f32[2,44,22]{2,1,0:T(8,128)}', space=vmem, size = 0xc000, scoped, tag = 'scratch operand']
  #allocation3 [shape = 'f32[2,7,44,16]{3,2,1,0:T(8,128)}', space=vmem, size = 0x54000, scoped, tag = 'scratch operand']
  #allocation4 [shape = 'f32[38,16]{1,0:T(8,128)}', space=vmem, size = 0x5000, scoped, tag = 'scratch operand']
  %s0 = inlined_call_operand.hbm [shape: f32[2,4,16,16], index: 0, kind: input, shape index: {}]
  %s1 = inlined_call_operand.vmem [shape: f32[98], index: 1, kind: input, shape index: {}]
  %s2 = inlined_call_operand.hbm [shape: f32[2,16,16], index: 2, kind: output, shape index: {}]
  %s3 = sld [smem:[#allocation0]]
  $region45: #{tpu_custom_call.1} parent=0
    _
  %s5 = ssub.s32 1, %s3
  %s6 = scalar_select 0, %s5, %s3
  $region1: #{tpu_custom_call.1} parent=0
    #allocation5 [shape = 'u8[65536]{0}', space=vmem, size = 0x10000, scoped, tag = 'input window, operand 0, single buffered']
    #allocation6 [shape = 's32[1]{0}', space=sflag, size = 0x4, scoped, tag = 'scoped memory for tpu_custom_call.1']
    #allocation7 [shape = 's32[1]{0}', space=sflag, size = 0x4, scoped, tag = 'scoped memory for tpu_custom_call.1']
    #allocation8 [shape = 's32[1]{0}', space=sflag, size = 0x4, scoped, tag = 'scoped memory for tpu_custom_call.1']
    #allocation9 [shape = 'u8[512]{0}', space=smem, size = 0x200, scoped, tag = 'input window, operand 1, single buffered']
    #allocation10 [shape = 'u8[16384]{0}', space=vmem, size = 0x4000, scoped, tag = 'output window, operand 0, single buffered']
    %7 = vsyncpa [#allocation6], 0
    %8 = vsyncpa [#allocation8], 0
    %9 = vsyncpa [#allocation7], 0
    // Predicated region
    $region2: #{tpu_custom_call.1} parent=1 // pred_check
      _
    $region3: #{tpu_custom_call.1} parent=1 // pred_check_branch
      %11 = sbr.rel (0) target = $region5
    $region4: #{tpu_custom_call.1} parent=1 // pred_region
      %s13 = ssub.s32 2048, 2048
      %14 = vsyncadd [#allocation6], %s13
      %s15 = sshll.u32 [#allocation5], 4
      %s16 = int_to_ptr.vmem [resolvable:$true] %s15
      %21 = dma.hbm_to_vmem [thread:$0]  %s0, 2048, %s16, [#allocation6], 128, 128, 8
    $region5: #{tpu_custom_call.1} parent=1 // pred_fallthru
      _
    // Predicated region
    $region6: #{tpu_custom_call.1} parent=1 // pred_check
      _
    $region7: #{tpu_custom_call.1} parent=1 // pred_check_branch
      %23 = sbr.rel (0) target = $region9
    $region8: #{tpu_custom_call.1} parent=1 // pred_region
      %s25 = ssub.s32 16, 16
      %26 = vsyncadd [#allocation8], %s25
      %s28 = sshll.u32 %s1, 4
      %s29 = int_to_ptr.vmem [resolvable:$true] %s28
      %31 = dma.vmem_to_smem %s29, 16, [#allocation9], [#allocation8]
    $region9: #{tpu_custom_call.1} parent=1 // pred_fallthru
      _
    // Predicated region
    $region10: #{tpu_custom_call.1} parent=1 // pred_check
      _
    $region11: #{tpu_custom_call.1} parent=1 // pred_check_branch
      %33 = sbr.rel (0) target = $region13
    $region12: #{tpu_custom_call.1} parent=1 // pred_region
      %34 = dma.done [#allocation6], 2048
    $region13: #{tpu_custom_call.1} parent=1 // pred_fallthru
      _
    // Predicated region
    $region14: #{tpu_custom_call.1} parent=1 // pred_check
      _
    $region15: #{tpu_custom_call.1} parent=1 // pred_check_branch
      %36 = sbr.rel (0) target = $region17
    $region16: #{tpu_custom_call.1} parent=1 // pred_region
      %37 = dma.done [#allocation8], 16
    $region17: #{tpu_custom_call.1} parent=1 // pred_fallthru
      _
    %38 = sfence
    %p39 = scmp.eq.s32.totalorder 0, 0
    // Predicated region
    $region18: #{tpu_custom_call.1} parent=1 // pred_check
      %p40 = pneg %p39
    $region19: #{tpu_custom_call.1} parent=1 // pred_check_branch
      %42 = sbr.rel (%p40) target = $region21
    $region20: #{tpu_custom_call.1} parent=1 // pred_region
      %vm43 = vcmask 179200
      %44 = vst.msk [vmem:[#allocation2] sm:$0xff] %vm43, 0.0
      %45 = vst.msk [vmem:[#allocation2 + $0x8] sm:$0xff] %vm43, 0.0
      %46 = vst.msk [vmem:[#allocation2 + $0x10] sm:$0xff] %vm43, 0.0
      %47 = vst.msk [vmem:[#allocation2 + $0x18] sm:$0xff] %vm43, 0.0
      %48 = vst.msk [vmem:[#allocation2 + $0x20] sm:$0xff] %vm43, 0.0
      %vm49 = vcmask 175104
      %50 = vst.msk [vmem:[#allocation2 + $0x28] sm:$0xf] %vm49, 0.0
      %51 = vst.msk [vmem:[#allocation2 + $0x30] sm:$0xff] %vm43, 0.0
      %52 = vst.msk [vmem:[#allocation2 + $0x38] sm:$0xff] %vm43, 0.0
      %53 = vst.msk [vmem:[#allocation2 + $0x40] sm:$0xff] %vm43, 0.0
      %54 = vst.msk [vmem:[#allocation2 + $0x48] sm:$0xff] %vm43, 0.0
      %55 = vst.msk [vmem:[#allocation2 + $0x50] sm:$0xff] %vm43, 0.0
      %56 = vst.msk [vmem:[#allocation2 + $0x58] sm:$0xf] %vm49, 0.0
      %v57 = vld [vmem:[#allocation5] sm:$0xff]
      %v58 = vld [vmem:[#allocation5 + $0x8] sm:$0xff]
      %v59 = vld [vmem:[#allocation5 + $0x10] sm:$0xff]
      %v60 = vld [vmem:[#allocation5 + $0x18] sm:$0xff]
      %v61 = vld [vmem:[#allocation5 + $0x20] sm:$0xff]
      %v62 = vld [vmem:[#allocation5 + $0x28] sm:$0xff]
      %v63 = vld [vmem:[#allocation5 + $0x30] sm:$0xff]
      %v64 = vld [vmem:[#allocation5 + $0x38] sm:$0xff]
      %vm65 = vcmask 130048
      %v66 = vsel %vm65, %v57, 0.0
      %v67 = vsel %vm65, %v59, 0.0
      %v68 = vadd.f32 %v66, %v67
      %v69 = vsel %vm65, %v61, 0.0
      %v70 = vadd.f32 %v68, %v69
      %v71 = vsel %vm65, %v63, 0.0
      %v72 = vadd.f32 %v70, %v71
      %v73 = vsel %vm65, %v58, 0.0
      %v74 = vsel %vm65, %v60, 0.0
      %v75 = vadd.f32 %v73, %v74
      %v76 = vsel %vm65, %v62, 0.0
      %v77 = vadd.f32 %v75, %v76
      %v78 = vsel %vm65, %v64, 0.0
      %v79 = vadd.f32 %v77, %v78
      %82 = vrot.lane.b32.xlu0 %v72, 3
      %v83 = vpop.permute.xlu0 %82
      %84 = vrot.lane.b32.xlu0 %v79, 3
      %v85 = vpop.permute.xlu0 %84
      %vm88 = vcmask 154648
      %89 = vst.msk [vmem:[#allocation2 + $0x3] sm:$0xff] %vm88, %v83
      %90 = vst.msk [vmem:[#allocation2 + $0xb] sm:$0xff] %vm88, %v85
      %v91 = vsel %vm65, %v57, -inf
      %v92 = vsel %vm65, %v59, -inf
      %v93 = vsel %vm65, %v61, -inf
      %v94 = vmax.f32 %v91, %v93
      %v95 = vsel %vm65, %v63, -inf
      %v96 = vmax.f32 %v92, %v95
      %v97 = vmax.f32 %v94, %v96
      %v98 = vsel %vm65, %v58, -inf
      %v99 = vsel %vm65, %v60, -inf
      %v100 = vsel %vm65, %v62, -inf
      %v101 = vmax.f32 %v98, %v100
      %v102 = vsel %vm65, %v64, -inf
      %v103 = vmax.f32 %v99, %v102
      %v104 = vmax.f32 %v101, %v103
      %107 = vrot.lane.b32.xlu0 %v97, 3
      %v108 = vpop.permute.xlu0 %107
      %109 = vrot.lane.b32.xlu0 %v104, 3
      %v110 = vpop.permute.xlu0 %109
      %s113 = scalar_lea.vmem [#allocation2], 48
      %114 = vst.msk [vmem:[%s113 + $0x3] sm:$0xff] %vm88, %v108
      %115 = vst.msk [vmem:[%s113 + $0xb] sm:$0xff] %vm88, %v110
      %s116 = scalar_lea.vmem [#allocation5], 64
      %v117 = vld [vmem:[%s116] sm:$0xff]
      %v118 = vld [vmem:[%s116 + $0x8] sm:$0xff]
      %v119 = vld [vmem:[%s116 + $0x10] sm:$0xff]
      %v120 = vld [vmem:[%s116 + $0x18] sm:$0xff]
      %v121 = vld [vmem:[%s116 + $0x20] sm:$0xff]
      %v122 = vld [vmem:[%s116 + $0x28] sm:$0xff]
      %v123 = vld [vmem:[%s116 + $0x30] sm:$0xff]
      %v124 = vld [vmem:[%s116 + $0x38] sm:$0xff]
      %v125 = vsel %vm65, %v117, 0.0
      %v126 = vsel %vm65, %v119, 0.0
      %v127 = vadd.f32 %v125, %v126
      %v128 = vsel %vm65, %v121, 0.0
      %v129 = vadd.f32 %v127, %v128
      %v130 = vsel %vm65, %v123, 0.0
      %v131 = vadd.f32 %v129, %v130
      %v132 = vsel %vm65, %v118, 0.0
      %v133 = vsel %vm65, %v120, 0.0
      %v134 = vadd.f32 %v132, %v133
      %v135 = vsel %vm65, %v122, 0.0
      %v136 = vadd.f32 %v134, %v135
      %v137 = vsel %vm65, %v124, 0.0
      %v138 = vadd.f32 %v136, %v137
      %141 = vrot.lane.b32.xlu0 %v131, 3
      %v142 = vpop.permute.xlu0 %141
      %143 = vrot.lane.b32.xlu0 %v138, 3
      %v144 = vpop.permute.xlu0 %143
      %147 = vst.msk [vmem:[#allocation2 + $0x19] sm:$0xff] %vm88, %v142
      %148 = vst.msk [vmem:[#allocation2 + $0x21] sm:$0xff] %vm88, %v144
      %v149 = vsel %vm65, %v117, -inf
      %v150 = vsel %vm65, %v119, -inf
      %v151 = vsel %vm65, %v121, -inf
      %v152 = vmax.f32 %v149, %v151
      %v153 = vsel %vm65, %v123, -inf
      %v154 = vmax.f32 %v150, %v153
      %v155 = vmax.f32 %v152, %v154
      %v156 = vsel %vm65, %v118, -inf
      %v157 = vsel %vm65, %v120, -inf
      %v158 = vsel %vm65, %v122, -inf
      %v159 = vmax.f32 %v156, %v158
      %v160 = vsel %vm65, %v124, -inf
      %v161 = vmax.f32 %v157, %v160
      %v162 = vmax.f32 %v159, %v161
      %165 = vrot.lane.b32.xlu0 %v155, 3
      %v166 = vpop.permute.xlu0 %165
      %167 = vrot.lane.b32.xlu0 %v162, 3
      %v168 = vpop.permute.xlu0 %167
      %171 = vst.msk [vmem:[%s113 + $0x19] sm:$0xff] %vm88, %v166
      %172 = vst.msk [vmem:[%s113 + $0x21] sm:$0xff] %vm88, %v168
    $region21: #{tpu_custom_call.1} parent=1 // pred_fallthru
      _
    %p173 = scmp.gt.s32.totalorder 0, 0
    // Predicated region
    $region22: #{tpu_custom_call.1} parent=1 // pred_check
      %p174 = pneg %p173
    $region23: #{tpu_custom_call.1} parent=1 // pred_check_branch
      %176 = sbr.rel (%p174) target = $region25
    $region24: #{tpu_custom_call.1} parent=1 // pred_region
      %v177 = vld [vmem:[#allocation5] sm:$0xff]
      %v178 = vld [vmem:[#allocation5 + $0x8] sm:$0xff]
      %v179 = vld [vmem:[#allocation5 + $0x10] sm:$0xff]
      %v180 = vld [vmem:[#allocation5 + $0x18] sm:$0xff]
      %v181 = vld [vmem:[#allocation5 + $0x20] sm:$0xff]
      %v182 = vld [vmem:[#allocation5 + $0x28] sm:$0xff]
      %v183 = vld [vmem:[#allocation5 + $0x30] sm:$0xff]
      %v184 = vld [vmem:[#allocation5 + $0x38] sm:$0xff]
      %v185 = vld [vmem:[#allocation2 + $0x3] sm:$0xff]
      %v186 = vld [vmem:[#allocation2 + $0xb] sm:$0xff]
      %vm187 = vcmask 130048
      %v188 = vsel %vm187, %v177, 0.0
      %v189 = vsel %vm187, %v179, 0.0
      %v190 = vadd.f32 %v188, %v189
      %v191 = vsel %vm187, %v181, 0.0
      %v192 = vadd.f32 %v190, %v191
      %v193 = vsel %vm187, %v183, 0.0
      %v194 = vadd.f32 %v192, %v193
      %v195 = vsel %vm187, %v178, 0.0
      %v196 = vsel %vm187, %v180, 0.0
      %v197 = vadd.f32 %v195, %v196
      %v198 = vsel %vm187, %v182, 0.0
      %v199 = vadd.f32 %v197, %v198
      %v200 = vsel %vm187, %v184, 0.0
      %v201 = vadd.f32 %v199, %v200
      %204 = vrot.lane.b32.xlu0 %v194, 3
      %v205 = vpop.permute.xlu0 %204
      %206 = vrot.lane.b32.xlu0 %v201, 3
      %v207 = vpop.permute.xlu0 %206
      %v210 = vadd.f32 %v185, %v205
      %v211 = vadd.f32 %v186, %v207
      %vm212 = vcmask 154648
      %213 = vst.msk [vmem:[#allocation2 + $0x3] sm:$0xff] %vm212, %v210
      %214 = vst.msk [vmem:[#allocation2 + $0xb] sm:$0xff] %vm212, %v211
      %s215 = scalar_lea.vmem [#allocation2], 48
      %v216 = vld [vmem:[%s215 + $0x3] sm:$0xff]
      %v217 = vld [vmem:[%s215 + $0xb] sm:$0xff]
      %v218 = vsel %vm187, %v177, -inf
      %v219 = vsel %vm187, %v179, -inf
      %v220 = vsel %vm187, %v181, -inf
      %v221 = vmax.f32 %v218, %v220
      %v222 = vsel %vm187, %v183, -inf
      %v223 = vmax.f32 %v219, %v222
      %v224 = vmax.f32 %v221, %v223
      %v225 = vsel %vm187, %v178, -inf
      %v226 = vsel %vm187, %v180, -inf
      %v227 = vsel %vm187, %v182, -inf
      %v228 = vmax.f32 %v225, %v227
      %v229 = vsel %vm187, %v184, -inf
      %v230 = vmax.f32 %v226, %v229
      %v231 = vmax.f32 %v228, %v230
      %234 = vrot.lane.b32.xlu0 %v224, 3
      %v235 = vpop.permute.xlu0 %234
      %236 = vrot.lane.b32.xlu0 %v231, 3
      %v237 = vpop.permute.xlu0 %236
      %v240 = vmax.f32 %v216, %v235
      %v241 = vmax.f32 %v217, %v237
      %242 = vst.msk [vmem:[%s215 + $0x3] sm:$0xff] %vm212, %v240
      %243 = vst.msk [vmem:[%s215 + $0xb] sm:$0xff] %vm212, %v241
      %s244 = scalar_lea.vmem [#allocation5], 64
      %v245 = vld [vmem:[%s244] sm:$0xff]
      %v246 = vld [vmem:[%s244 + $0x8] sm:$0xff]
      %v247 = vld [vmem:[%s244 + $0x10] sm:$0xff]
      %v248 = vld [vmem:[%s244 + $0x18] sm:$0xff]
      %v249 = vld [vmem:[%s244 + $0x20] sm:$0xff]
      %v250 = vld [vmem:[%s244 + $0x28] sm:$0xff]
      %v251 = vld [vmem:[%s244 + $0x30] sm:$0xff]
      %v252 = vld [vmem:[%s244 + $0x38] sm:$0xff]
      %v253 = vld [vmem:[#allocation2 + $0x19] sm:$0xff]
      %v254 = vld [vmem:[#allocation2 + $0x21] sm:$0xff]
      %v255 = vsel %vm187, %v245, 0.0
      %v256 = vsel %vm187, %v247, 0.0
      %v257 = vadd.f32 %v255, %v256
      %v258 = vsel %vm187, %v249, 0.0
      %v259 = vadd.f32 %v257, %v258
      %v260 = vsel %vm187, %v251, 0.0
      %v261 = vadd.f32 %v259, %v260
      %v262 = vsel %vm187, %v246, 0.0
      %v263 = vsel %vm187, %v248, 0.0
      %v264 = vadd.f32 %v262, %v263
      %v265 = vsel %vm187, %v250, 0.0
      %v266 = vadd.f32 %v264, %v265
      %v267 = vsel %vm187, %v252, 0.0
      %v268 = vadd.f32 %v266, %v267
      %271 = vrot.lane.b32.xlu0 %v261, 3
      %v272 = vpop.permute.xlu0 %271
      %273 = vrot.lane.b32.xlu0 %v268, 3
      %v274 = vpop.permute.xlu0 %273
      %v277 = vadd.f32 %v253, %v272
      %v278 = vadd.f32 %v254, %v274
      %279 = vst.msk [vmem:[#allocation2 + $0x19] sm:$0xff] %vm212, %v277
      %280 = vst.msk [vmem:[#allocation2 + $0x21] sm:$0xff] %vm212, %v278
      %v281 = vld [vmem:[%s215 + $0x19] sm:$0xff]
      %v282 = vld [vmem:[%s215 + $0x21] sm:$0xff]
      %v283 = vsel %vm187, %v245, -inf
      %v284 = vsel %vm187, %v247, -inf
      %v285 = vsel %vm187, %v249, -inf
      %v286 = vmax.f32 %v283, %v285
      %v287 = vsel %vm187, %v251, -inf
      %v288 = vmax.f32 %v284, %v287
      %v289 = vmax.f32 %v286, %v288
      %v290 = vsel %vm187, %v246, -inf
      %v291 = vsel %vm187, %v248, -inf
      %v292 = vsel %vm187, %v250, -inf
      %v293 = vmax.f32 %v290, %v292
      %v294 = vsel %vm187, %v252, -inf
      %v295 = vmax.f32 %v291, %v294
      %v296 = vmax.f32 %v293, %v295
      %299 = vrot.lane.b32.xlu0 %v289, 3
      %v300 = vpop.permute.xlu0 %299
      %301 = vrot.lane.b32.xlu0 %v296, 3
      %v302 = vpop.permute.xlu0 %301
      %v305 = vmax.f32 %v281, %v300
      %v306 = vmax.f32 %v282, %v302
      %307 = vst.msk [vmem:[%s215 + $0x19] sm:$0xff] %vm212, %v305
      %308 = vst.msk [vmem:[%s215 + $0x21] sm:$0xff] %vm212, %v306
    $region25: #{tpu_custom_call.1} parent=1 // pred_fallthru
      _
    // Predicated region
    $region26: #{tpu_custom_call.1} parent=1 // pred_check
      %p309 = pneg %p39
    $region27: #{tpu_custom_call.1} parent=1 // pred_check_branch
      %311 = sbr.rel (%p309) target = $region29
    $region28: #{tpu_custom_call.1} parent=1 // pred_region
      %v312 = vld [vmem:[#allocation2] sm:$0xff]
      %v313 = vld [vmem:[#allocation2 + $0x8] sm:$0xff]
      %v314 = vld [vmem:[#allocation2 + $0x10] sm:$0xff]
      %v315 = vld [vmem:[#allocation2 + $0x18] sm:$0xff]
      %v316 = vld [vmem:[#allocation2 + $0x20] sm:$0xff]
      %v317 = vld [vmem:[#allocation2 + $0x28] sm:$0xf]
      %v318 = vmul.f32 %v312, 0.25
      %v319 = vmul.f32 %v313, 0.25
      %v320 = vmul.f32 %v314, 0.25
      %v321 = vmul.f32 %v315, 0.25
      %v322 = vmul.f32 %v316, 0.25
      %v323 = vmul.f32 %v317, 0.25
      %vm324 = vcmask 179200
      %325 = vst.msk [vmem:[#allocation2] sm:$0xff] %vm324, %v318
      %326 = vst.msk [vmem:[#allocation2 + $0x8] sm:$0xff] %vm324, %v319
      %327 = vst.msk [vmem:[#allocation2 + $0x10] sm:$0xff] %vm324, %v320
      %328 = vst.msk [vmem:[#allocation2 + $0x18] sm:$0xff] %vm324, %v321
      %329 = vst.msk [vmem:[#allocation2 + $0x20] sm:$0xff] %vm324, %v322
      %vm330 = vcmask 175104
      %331 = vst.msk [vmem:[#allocation2 + $0x28] sm:$0xf] %vm330, %v323
      %v332 = vld [vmem:[#allocation2] sm:$0xff]
      %v333 = vld [vmem:[#allocation2 + $0x8] sm:$0xff]
      %v334 = vld [vmem:[#allocation2 + $0x10] sm:$0xff]
      %v335 = vld [vmem:[#allocation2 + $0x18] sm:$0xff]
      %v336 = vld [vmem:[#allocation2 + $0x20] sm:$0xff]
      %v337 = vld [vmem:[#allocation2 + $0x28] sm:$0xf]
      %vm338 = vcmask 130048
      %339 = vst.msk [vmem:[#allocation3] sm:$0xff] %vm338, %v332
      %340 = vst.msk [vmem:[#allocation3 + $0x8] sm:$0xff] %vm338, %v333
      %341 = vst.msk [vmem:[#allocation3 + $0x10] sm:$0xff] %vm338, %v334
      %342 = vst.msk [vmem:[#allocation3 + $0x18] sm:$0xff] %vm338, %v335
      %343 = vst.msk [vmem:[#allocation3 + $0x20] sm:$0xff] %vm338, %v336
      %vm344 = vcmask 125952
      %345 = vst.msk [vmem:[#allocation3 + $0x28] sm:$0xf] %vm344, %v337
      %v346 = vld [vmem:[#allocation2] sm:$0xff]
      %v347 = vld [vmem:[#allocation2 + $0x8] sm:$0xff]
      %v348 = vld [vmem:[#allocation2 + $0x10] sm:$0xff]
      %v349 = vld [vmem:[#allocation2 + $0x18] sm:$0xff]
      %v350 = vld [vmem:[#allocation2 + $0x20] sm:$0xff]
      %v351 = vld [vmem:[#allocation2 + $0x28] sm:$0xf]
      %358 = vrot.lane.b32.xlu0 %v346, 127
      %v359 = vpop.permute.xlu0 %358
      %360 = vrot.lane.b32.xlu0 %v347, 127
      %v361 = vpop.permute.xlu0 %360
      %362 = vrot.lane.b32.xlu0 %v348, 127
      %v363 = vpop.permute.xlu0 %362
      %364 = vrot.lane.b32.xlu0 %v349, 127
      %v365 = vpop.permute.xlu0 %364
      %366 = vrot.lane.b32.xlu0 %v350, 127
      %v367 = vpop.permute.xlu0 %366
      %368 = vrot.lane.b32.xlu0 %v351, 127
      %v369 = vpop.permute.xlu0 %368
      %s376 = scalar_lea.vmem [#allocation3], 48
      %377 = vst.msk [vmem:[%s376] sm:$0xff] %vm338, %v359
      %378 = vst.msk [vmem:[%s376 + $0x8] sm:$0xff] %vm338, %v361
      %379 = vst.msk [vmem:[%s376 + $0x10] sm:$0xff] %vm338, %v363
      %380 = vst.msk [vmem:[%s376 + $0x18] sm:$0xff] %vm338, %v365
      %381 = vst.msk [vmem:[%s376 + $0x20] sm:$0xff] %vm338, %v367
      %382 = vst.msk [vmem:[%s376 + $0x28] sm:$0xf] %vm344, %v369
      %v383 = vld [vmem:[#allocation2] sm:$0xff]
      %v384 = vld [vmem:[#allocation2 + $0x8] sm:$0xff]
      %v385 = vld [vmem:[#allocation2 + $0x10] sm:$0xff]
      %v386 = vld [vmem:[#allocation2 + $0x18] sm:$0xff]
      %v387 = vld [vmem:[#allocation2 + $0x20] sm:$0xff]
      %v388 = vld [vmem:[#allocation2 + $0x28] sm:$0xf]
      %395 = vrot.lane.b32.xlu0 %v383, 126
      %v396 = vpop.permute.xlu0 %395
      %397 = vrot.lane.b32.xlu0 %v384, 126
      %v398 = vpop.permute.xlu0 %397
      %399 = vrot.lane.b32.xlu0 %v385, 126
      %v400 = vpop.permute.xlu0 %399
      %401 = vrot.lane.b32.xlu0 %v386, 126
      %v402 = vpop.permute.xlu0 %401
      %403 = vrot.lane.b32.xlu0 %v387, 126
      %v404 = vpop.permute.xlu0 %403
      %405 = vrot.lane.b32.xlu0 %v388, 126
      %v406 = vpop.permute.xlu0 %405
      %s413 = scalar_lea.vmem [#allocation3], 96
      %414 = vst.msk [vmem:[%s413] sm:$0xff] %vm338, %v396
      %415 = vst.msk [vmem:[%s413 + $0x8] sm:$0xff] %vm338, %v398
      %416 = vst.msk [vmem:[%s413 + $0x10] sm:$0xff] %vm338, %v400
      %417 = vst.msk [vmem:[%s413 + $0x18] sm:$0xff] %vm338, %v402
      %418 = vst.msk [vmem:[%s413 + $0x20] sm:$0xff] %vm338, %v404
      %419 = vst.msk [vmem:[%s413 + $0x28] sm:$0xf] %vm344, %v406
      %v420 = vld [vmem:[#allocation2] sm:$0xff]
      %v421 = vld [vmem:[#allocation2 + $0x8] sm:$0xff]
      %v422 = vld [vmem:[#allocation2 + $0x10] sm:$0xff]
      %v423 = vld [vmem:[#allocation2 + $0x18] sm:$0xff]
      %v424 = vld [vmem:[#allocation2 + $0x20] sm:$0xff]
      %v425 = vld [vmem:[#allocation2 + $0x28] sm:$0xf]
      %432 = vrot.lane.b32.xlu0 %v420, 125
      %v433 = vpop.permute.xlu0 %432
      %434 = vrot.lane.b32.xlu0 %v421, 125
      %v435 = vpop.permute.xlu0 %434
      %436 = vrot.lane.b32.xlu0 %v422, 125
      %v437 = vpop.permute.xlu0 %436
      %438 = vrot.lane.b32.xlu0 %v423, 125
      %v439 = vpop.permute.xlu0 %438
      %440 = vrot.lane.b32.xlu0 %v424, 125
      %v441 = vpop.permute.xlu0 %440
      %442 = vrot.lane.b32.xlu0 %v425, 125
      %v443 = vpop.permute.xlu0 %442
      %s450 = scalar_lea.vmem [#allocation3], 144
      %451 = vst.msk [vmem:[%s450] sm:$0xff] %vm338, %v433
      %452 = vst.msk [vmem:[%s450 + $0x8] sm:$0xff] %vm338, %v435
      %453 = vst.msk [vmem:[%s450 + $0x10] sm:$0xff] %vm338, %v437
      %454 = vst.msk [vmem:[%s450 + $0x18] sm:$0xff] %vm338, %v439
      %455 = vst.msk [vmem:[%s450 + $0x20] sm:$0xff] %vm338, %v441
      %456 = vst.msk [vmem:[%s450 + $0x28] sm:$0xf] %vm344, %v443
      %v457 = vld [vmem:[#allocation2] sm:$0xff]
      %v458 = vld [vmem:[#allocation2 + $0x8] sm:$0xff]
      %v459 = vld [vmem:[#allocation2 + $0x10] sm:$0xff]
      %v460 = vld [vmem:[#allocation2 + $0x18] sm:$0xff]
      %v461 = vld [vmem:[#allocation2 + $0x20] sm:$0xff]
      %v462 = vld [vmem:[#allocation2 + $0x28] sm:$0xf]
      %469 = vrot.lane.b32.xlu0 %v457, 124
      %v470 = vpop.permute.xlu0 %469
      %471 = vrot.lane.b32.xlu0 %v458, 124
      %v472 = vpop.permute.xlu0 %471
      %473 = vrot.lane.b32.xlu0 %v459, 124
      %v474 = vpop.permute.xlu0 %473
      %475 = vrot.lane.b32.xlu0 %v460, 124
      %v476 = vpop.permute.xlu0 %475
      %477 = vrot.lane.b32.xlu0 %v461, 124
      %v478 = vpop.permute.xlu0 %477
      %479 = vrot.lane.b32.xlu0 %v462, 124
      %v480 = vpop.permute.xlu0 %479
      %s487 = scalar_lea.vmem [#allocation3], 192
      %488 = vst.msk [vmem:[%s487] sm:$0xff] %vm338, %v470
      %489 = vst.msk [vmem:[%s487 + $0x8] sm:$0xff] %vm338, %v472
      %490 = vst.msk [vmem:[%s487 + $0x10] sm:$0xff] %vm338, %v474
      %491 = vst.msk [vmem:[%s487 + $0x18] sm:$0xff] %vm338, %v476
      %492 = vst.msk [vmem:[%s487 + $0x20] sm:$0xff] %vm338, %v478
      %493 = vst.msk [vmem:[%s487 + $0x28] sm:$0xf] %vm344, %v480
      %v494 = vld [vmem:[#allocation2] sm:$0xff]
      %v495 = vld [vmem:[#allocation2 + $0x8] sm:$0xff]
      %v496 = vld [vmem:[#allocation2 + $0x10] sm:$0xff]
      %v497 = vld [vmem:[#allocation2 + $0x18] sm:$0xff]
      %v498 = vld [vmem:[#allocation2 + $0x20] sm:$0xff]
      %v499 = vld [vmem:[#allocation2 + $0x28] sm:$0xf]
      %506 = vrot.lane.b32.xlu0 %v494, 123
      %v507 = vpop.permute.xlu0 %506
      %508 = vrot.lane.b32.xlu0 %v495, 123
      %v509 = vpop.permute.xlu0 %508
      %510 = vrot.lane.b32.xlu0 %v496, 123
      %v511 = vpop.permute.xlu0 %510
      %512 = vrot.lane.b32.xlu0 %v497, 123
      %v513 = vpop.permute.xlu0 %512
      %514 = vrot.lane.b32.xlu0 %v498, 123
      %v515 = vpop.permute.xlu0 %514
      %516 = vrot.lane.b32.xlu0 %v499, 123
      %v517 = vpop.permute.xlu0 %516
      %s524 = scalar_lea.vmem [#allocation3], 240
      %525 = vst.msk [vmem:[%s524] sm:$0xff] %vm338, %v507
      %526 = vst.msk [vmem:[%s524 + $0x8] sm:$0xff] %vm338, %v509
      %527 = vst.msk [vmem:[%s524 + $0x10] sm:$0xff] %vm338, %v511
      %528 = vst.msk [vmem:[%s524 + $0x18] sm:$0xff] %vm338, %v513
      %529 = vst.msk [vmem:[%s524 + $0x20] sm:$0xff] %vm338, %v515
      %530 = vst.msk [vmem:[%s524 + $0x28] sm:$0xf] %vm344, %v517
      %v531 = vld [vmem:[#allocation2] sm:$0xff]
      %v532 = vld [vmem:[#allocation2 + $0x8] sm:$0xff]
      %v533 = vld [vmem:[#allocation2 + $0x10] sm:$0xff]
      %v534 = vld [vmem:[#allocation2 + $0x18] sm:$0xff]
      %v535 = vld [vmem:[#allocation2 + $0x20] sm:$0xff]
      %v536 = vld [vmem:[#allocation2 + $0x28] sm:$0xf]
      %543 = vrot.lane.b32.xlu0 %v531, 122
      %v544 = vpop.permute.xlu0 %543
      %545 = vrot.lane.b32.xlu0 %v532, 122
      %v546 = vpop.permute.xlu0 %545
      %547 = vrot.lane.b32.xlu0 %v533, 122
      %v548 = vpop.permute.xlu0 %547
      %549 = vrot.lane.b32.xlu0 %v534, 122
      %v550 = vpop.permute.xlu0 %549
      %551 = vrot.lane.b32.xlu0 %v535, 122
      %v552 = vpop.permute.xlu0 %551
      %553 = vrot.lane.b32.xlu0 %v536, 122
      %v554 = vpop.permute.xlu0 %553
      %s561 = scalar_lea.vmem [#allocation3], 288
      %562 = vst.msk [vmem:[%s561] sm:$0xff] %vm338, %v544
      %563 = vst.msk [vmem:[%s561 + $0x8] sm:$0xff] %vm338, %v546
      %564 = vst.msk [vmem:[%s561 + $0x10] sm:$0xff] %vm338, %v548
      %565 = vst.msk [vmem:[%s561 + $0x18] sm:$0xff] %vm338, %v550
      %566 = vst.msk [vmem:[%s561 + $0x20] sm:$0xff] %vm338, %v552
      %567 = vst.msk [vmem:[%s561 + $0x28] sm:$0xf] %vm344, %v554
      %s568 = scalar_lea.vmem [#allocation2], 48
      %v569 = vld [vmem:[%s568] sm:$0xff]
      %v570 = vld [vmem:[%s568 + $0x8] sm:$0xff]
      %v571 = vld [vmem:[%s568 + $0x10] sm:$0xff]
      %v572 = vld [vmem:[%s568 + $0x18] sm:$0xff]
      %v573 = vld [vmem:[%s568 + $0x20] sm:$0xff]
      %v574 = vld [vmem:[%s568 + $0x28] sm:$0xf]
      %s575 = scalar_lea.vmem [#allocation3], 336
      %576 = vst.msk [vmem:[%s575] sm:$0xff] %vm338, %v569
      %577 = vst.msk [vmem:[%s575 + $0x8] sm:$0xff] %vm338, %v570
      %578 = vst.msk [vmem:[%s575 + $0x10] sm:$0xff] %vm338, %v571
      %579 = vst.msk [vmem:[%s575 + $0x18] sm:$0xff] %vm338, %v572
      %580 = vst.msk [vmem:[%s575 + $0x20] sm:$0xff] %vm338, %v573
      %581 = vst.msk [vmem:[%s575 + $0x28] sm:$0xf] %vm344, %v574
      %v582 = vld [vmem:[%s568] sm:$0xff]
      %v583 = vld [vmem:[%s568 + $0x8] sm:$0xff]
      %v584 = vld [vmem:[%s568 + $0x10] sm:$0xff]
      %v585 = vld [vmem:[%s568 + $0x18] sm:$0xff]
      %v586 = vld [vmem:[%s568 + $0x20] sm:$0xff]
      %v587 = vld [vmem:[%s568 + $0x28] sm:$0xf]
      %594 = vrot.lane.b32.xlu0 %v582, 127
      %v595 = vpop.permute.xlu0 %594
      %596 = vrot.lane.b32.xlu0 %v583, 127
      %v597 = vpop.permute.xlu0 %596
      %598 = vrot.lane.b32.xlu0 %v584, 127
      %v599 = vpop.permute.xlu0 %598
      %600 = vrot.lane.b32.xlu0 %v585, 127
      %v601 = vpop.permute.xlu0 %600
      %602 = vrot.lane.b32.xlu0 %v586, 127
      %v603 = vpop.permute.xlu0 %602
      %604 = vrot.lane.b32.xlu0 %v587, 127
      %v605 = vpop.permute.xlu0 %604
      %s612 = scalar_lea.vmem [#allocation3], 384
      %613 = vst.msk [vmem:[%s612] sm:$0xff] %vm338, %v595
      %614 = vst.msk [vmem:[%s612 + $0x8] sm:$0xff] %vm338, %v597
      %615 = vst.msk [vmem:[%s612 + $0x10] sm:$0xff] %vm338, %v599
      %616 = vst.msk [vmem:[%s612 + $0x18] sm:$0xff] %vm338, %v601
      %617 = vst.msk [vmem:[%s612 + $0x20] sm:$0xff] %vm338, %v603
      %618 = vst.msk [vmem:[%s612 + $0x28] sm:$0xf] %vm344, %v605
      %v619 = vld [vmem:[%s568] sm:$0xff]
      %v620 = vld [vmem:[%s568 + $0x8] sm:$0xff]
      %v621 = vld [vmem:[%s568 + $0x10] sm:$0xff]
      %v622 = vld [vmem:[%s568 + $0x18] sm:$0xff]
      %v623 = vld [vmem:[%s568 + $0x20] sm:$0xff]
      %v624 = vld [vmem:[%s568 + $0x28] sm:$0xf]
      %631 = vrot.lane.b32.xlu0 %v619, 126
      %v632 = vpop.permute.xlu0 %631
      %633 = vrot.lane.b32.xlu0 %v620, 126
      %v634 = vpop.permute.xlu0 %633
      %635 = vrot.lane.b32.xlu0 %v621, 126
      %v636 = vpop.permute.xlu0 %635
      %637 = vrot.lane.b32.xlu0 %v622, 126
      %v638 = vpop.permute.xlu0 %637
      %639 = vrot.lane.b32.xlu0 %v623, 126
      %v640 = vpop.permute.xlu0 %639
      %641 = vrot.lane.b32.xlu0 %v624, 126
      %v642 = vpop.permute.xlu0 %641
      %s649 = scalar_lea.vmem [#allocation3], 432
      %650 = vst.msk [vmem:[%s649] sm:$0xff] %vm338, %v632
      %651 = vst.msk [vmem:[%s649 + $0x8] sm:$0xff] %vm338, %v634
      %652 = vst.msk [vmem:[%s649 + $0x10] sm:$0xff] %vm338, %v636
      %653 = vst.msk [vmem:[%s649 + $0x18] sm:$0xff] %vm338, %v638
      %654 = vst.msk [vmem:[%s649 + $0x20] sm:$0xff] %vm338, %v640
      %655 = vst.msk [vmem:[%s649 + $0x28] sm:$0xf] %vm344, %v642
      %v656 = vld [vmem:[%s568] sm:$0xff]
      %v657 = vld [vmem:[%s568 + $0x8] sm:$0xff]
      %v658 = vld [vmem:[%s568 + $0x10] sm:$0xff]
      %v659 = vld [vmem:[%s568 + $0x18] sm:$0xff]
      %v660 = vld [vmem:[%s568 + $0x20] sm:$0xff]
      %v661 = vld [vmem:[%s568 + $0x28] sm:$0xf]
      %668 = vrot.lane.b32.xlu0 %v656, 125
      %v669 = vpop.permute.xlu0 %668
      %670 = vrot.lane.b32.xlu0 %v657, 125
      %v671 = vpop.permute.xlu0 %670
      %672 = vrot.lane.b32.xlu0 %v658, 125
      %v673 = vpop.permute.xlu0 %672
      %674 = vrot.lane.b32.xlu0 %v659, 125
      %v675 = vpop.permute.xlu0 %674
      %676 = vrot.lane.b32.xlu0 %v660, 125
      %v677 = vpop.permute.xlu0 %676
      %678 = vrot.lane.b32.xlu0 %v661, 125
      %v679 = vpop.permute.xlu0 %678
      %s686 = scalar_lea.vmem [#allocation3], 480
      %687 = vst.msk [vmem:[%s686] sm:$0xff] %vm338, %v669
      %688 = vst.msk [vmem:[%s686 + $0x8] sm:$0xff] %vm338, %v671
      %689 = vst.msk [vmem:[%s686 + $0x10] sm:$0xff] %vm338, %v673
      %690 = vst.msk [vmem:[%s686 + $0x18] sm:$0xff] %vm338, %v675
      %691 = vst.msk [vmem:[%s686 + $0x20] sm:$0xff] %vm338, %v677
      %692 = vst.msk [vmem:[%s686 + $0x28] sm:$0xf] %vm344, %v679
      %v693 = vld [vmem:[%s568] sm:$0xff]
      %v694 = vld [vmem:[%s568 + $0x8] sm:$0xff]
      %v695 = vld [vmem:[%s568 + $0x10] sm:$0xff]
      %v696 = vld [vmem:[%s568 + $0x18] sm:$0xff]
      %v697 = vld [vmem:[%s568 + $0x20] sm:$0xff]
      %v698 = vld [vmem:[%s568 + $0x28] sm:$0xf]
      %705 = vrot.lane.b32.xlu0 %v693, 124
      %v706 = vpop.permute.xlu0 %705
      %707 = vrot.lane.b32.xlu0 %v694, 124
      %v708 = vpop.permute.xlu0 %707
      %709 = vrot.lane.b32.xlu0 %v695, 124
      %v710 = vpop.permute.xlu0 %709
      %711 = vrot.lane.b32.xlu0 %v696, 124
      %v712 = vpop.permute.xlu0 %711
      %713 = vrot.lane.b32.xlu0 %v697, 124
      %v714 = vpop.permute.xlu0 %713
      %715 = vrot.lane.b32.xlu0 %v698, 124
      %v716 = vpop.permute.xlu0 %715
      %s723 = scalar_lea.vmem [#allocation3], 528
      %724 = vst.msk [vmem:[%s723] sm:$0xff] %vm338, %v706
      %725 = vst.msk [vmem:[%s723 + $0x8] sm:$0xff] %vm338, %v708
      %726 = vst.msk [vmem:[%s723 + $0x10] sm:$0xff] %vm338, %v710
      %727 = vst.msk [vmem:[%s723 + $0x18] sm:$0xff] %vm338, %v712
      %728 = vst.msk [vmem:[%s723 + $0x20] sm:$0xff] %vm338, %v714
      %729 = vst.msk [vmem:[%s723 + $0x28] sm:$0xf] %vm344, %v716
      %v730 = vld [vmem:[%s568] sm:$0xff]
      %v731 = vld [vmem:[%s568 + $0x8] sm:$0xff]
      %v732 = vld [vmem:[%s568 + $0x10] sm:$0xff]
      %v733 = vld [vmem:[%s568 + $0x18] sm:$0xff]
      %v734 = vld [vmem:[%s568 + $0x20] sm:$0xff]
      %v735 = vld [vmem:[%s568 + $0x28] sm:$0xf]
      %742 = vrot.lane.b32.xlu0 %v730, 123
      %v743 = vpop.permute.xlu0 %742
      %744 = vrot.lane.b32.xlu0 %v731, 123
      %v745 = vpop.permute.xlu0 %744
      %746 = vrot.lane.b32.xlu0 %v732, 123
      %v747 = vpop.permute.xlu0 %746
      %748 = vrot.lane.b32.xlu0 %v733, 123
      %v749 = vpop.permute.xlu0 %748
      %750 = vrot.lane.b32.xlu0 %v734, 123
      %v751 = vpop.permute.xlu0 %750
      %752 = vrot.lane.b32.xlu0 %v735, 123
      %v753 = vpop.permute.xlu0 %752
      %s760 = scalar_lea.vmem [#allocation3], 576
      %761 = vst.msk [vmem:[%s760] sm:$0xff] %vm338, %v743
      %762 = vst.msk [vmem:[%s760 + $0x8] sm:$0xff] %vm338, %v745
      %763 = vst.msk [vmem:[%s760 + $0x10] sm:$0xff] %vm338, %v747
      %764 = vst.msk [vmem:[%s760 + $0x18] sm:$0xff] %vm338, %v749
      %765 = vst.msk [vmem:[%s760 + $0x20] sm:$0xff] %vm338, %v751
      %766 = vst.msk [vmem:[%s760 + $0x28] sm:$0xf] %vm344, %v753
      %v767 = vld [vmem:[%s568] sm:$0xff]
      %v768 = vld [vmem:[%s568 + $0x8] sm:$0xff]
      %v769 = vld [vmem:[%s568 + $0x10] sm:$0xff]
      %v770 = vld [vmem:[%s568 + $0x18] sm:$0xff]
      %v771 = vld [vmem:[%s568 + $0x20] sm:$0xff]
      %v772 = vld [vmem:[%s568 + $0x28] sm:$0xf]
      %779 = vrot.lane.b32.xlu0 %v767, 122
      %v780 = vpop.permute.xlu0 %779
      %781 = vrot.lane.b32.xlu0 %v768, 122
      %v782 = vpop.permute.xlu0 %781
      %783 = vrot.lane.b32.xlu0 %v769, 122
      %v784 = vpop.permute.xlu0 %783
      %785 = vrot.lane.b32.xlu0 %v770, 122
      %v786 = vpop.permute.xlu0 %785
      %787 = vrot.lane.b32.xlu0 %v771, 122
      %v788 = vpop.permute.xlu0 %787
      %789 = vrot.lane.b32.xlu0 %v772, 122
      %v790 = vpop.permute.xlu0 %789
      %s797 = scalar_lea.vmem [#allocation3], 624
      %798 = vst.msk [vmem:[%s797] sm:$0xff] %vm338, %v780
      %799 = vst.msk [vmem:[%s797 + $0x8] sm:$0xff] %vm338, %v782
      %800 = vst.msk [vmem:[%s797 + $0x10] sm:$0xff] %vm338, %v784
      %801 = vst.msk [vmem:[%s797 + $0x18] sm:$0xff] %vm338, %v786
      %802 = vst.msk [vmem:[%s797 + $0x20] sm:$0xff] %vm338, %v788
      %803 = vst.msk [vmem:[%s797 + $0x28] sm:$0xf] %vm344, %v790
      %804 = vst.msk [vmem:[#allocation4] sm:$0xff] %vm338, 0.0
      %805 = vst.msk [vmem:[#allocation4 + $0x8] sm:$0xff] %vm338, 0.0
      %806 = vst.msk [vmem:[#allocation4 + $0x10] sm:$0xff] %vm338, 0.0
      %807 = vst.msk [vmem:[#allocation4 + $0x18] sm:$0xff] %vm338, 0.0
      %vm808 = vcmask 128000
      %809 = vst.msk [vmem:[#allocation4 + $0x20] sm:$0x3f] %vm808, 0.0
      loop: start=0, step=1, limit=7
      $region30: #{tpu_custom_call.1} parent=28 // loop_pre_header
        _
      $region31: #{tpu_custom_call.1} parent=28 // loop_header
        %s811 = sphi 0, %s815
        %p812 = scmp.ge.s32.totalorder %s811, 7
      $region32: #{tpu_custom_call.1} parent=28 // loop_header_branch
        %814 = sbr.rel (%p812) target = $region36
      $region33: #{tpu_custom_call.1} parent=28 // loop_body
        %v816 = vld [vmem:[#allocation4] sm:$0xff]
        %v817 = vld [vmem:[#allocation4 + $0x8] sm:$0xff]
        %v818 = vld [vmem:[#allocation4 + $0x10] sm:$0xff]
        %v819 = vld [vmem:[#allocation4 + $0x18] sm:$0xff]
        %v820 = vld [vmem:[#allocation4 + $0x20] sm:$0x3f]
        %s821 = smul.u32 %s811, 7
        %s822 = sld [smem:[#allocation9 + %s821]]
        %s823 = scalar_lea.vmem [#allocation3], %s811
        %v824 = vld [vmem:[%s823] sm:$0xff]
        %v825 = vld [vmem:[%s823 + $0x8] sm:$0xff]
        %v826 = vld [vmem:[%s823 + $0x10] sm:$0xff]
        %v827 = vld [vmem:[%s823 + $0x18] sm:$0xff]
        %v828 = vld [vmem:[%s823 + $0x20] sm:$0x3f]
        %v829 = vstv %s822
        %v830 = vmul.f32 %v824, %v829
        %v831 = vmul.f32 %v825, %v829
        %v832 = vmul.f32 %v826, %v829
        %v833 = vmul.f32 %v827, %v829
        %v834 = vmul.f32 %v828, %v829
        %v835 = vadd.f32 %v816, %v830
        %v836 = vadd.f32 %v817, %v831
        %v837 = vadd.f32 %v818, %v832
        %v838 = vadd.f32 %v819, %v833
        %v839 = vadd.f32 %v820, %v834
        %s840 = sadd.s32 %s821, 1
        %s841 = sld [smem:[#allocation9 + %s840]]
        %s842 = sadd.s32 %s811, 48
        %s843 = scalar_lea.vmem [#allocation3], %s842
        %v844 = vld [vmem:[%s843] sm:$0xff]
        %v845 = vld [vmem:[%s843 + $0x8] sm:$0xff]
        %v846 = vld [vmem:[%s843 + $0x10] sm:$0xff]
        %v847 = vld [vmem:[%s843 + $0x18] sm:$0xff]
        %v848 = vld [vmem:[%s843 + $0x20] sm:$0x3f]
        %v849 = vstv %s841
        %v850 = vmul.f32 %v844, %v849
        %v851 = vmul.f32 %v845, %v849
        %v852 = vmul.f32 %v846, %v849
        %v853 = vmul.f32 %v847, %v849
        %v854 = vmul.f32 %v848, %v849
        %v855 = vadd.f32 %v835, %v850
        %v856 = vadd.f32 %v836, %v851
        %v857 = vadd.f32 %v837, %v852
        %v858 = vadd.f32 %v838, %v853
        %v859 = vadd.f32 %v839, %v854
        %s860 = sadd.s32 %s821, 2
        %s861 = sld [smem:[#allocation9 + %s860]]
        %s862 = sadd.s32 %s811, 96
        %s863 = scalar_lea.vmem [#allocation3], %s862
        %v864 = vld [vmem:[%s863] sm:$0xff]
        %v865 = vld [vmem:[%s863 + $0x8] sm:$0xff]
        %v866 = vld [vmem:[%s863 + $0x10] sm:$0xff]
        %v867 = vld [vmem:[%s863 + $0x18] sm:$0xff]
        %v868 = vld [vmem:[%s863 + $0x20] sm:$0x3f]
        %v869 = vstv %s861
        %v870 = vmul.f32 %v864, %v869
        %v871 = vmul.f32 %v865, %v869
        %v872 = vmul.f32 %v866, %v869
        %v873 = vmul.f32 %v867, %v869
        %v874 = vmul.f32 %v868, %v869
        %v875 = vadd.f32 %v855, %v870
        %v876 = vadd.f32 %v856, %v871
        %v877 = vadd.f32 %v857, %v872
        %v878 = vadd.f32 %v858, %v873
        %v879 = vadd.f32 %v859, %v874
        %s880 = sadd.s32 %s821, 3
        %s881 = sld [smem:[#allocation9 + %s880]]
        %s882 = sadd.s32 %s811, 144
        %s883 = scalar_lea.vmem [#allocation3], %s882
        %v884 = vld [vmem:[%s883] sm:$0xff]
        %v885 = vld [vmem:[%s883 + $0x8] sm:$0xff]
        %v886 = vld [vmem:[%s883 + $0x10] sm:$0xff]
        %v887 = vld [vmem:[%s883 + $0x18] sm:$0xff]
        %v888 = vld [vmem:[%s883 + $0x20] sm:$0x3f]
        %v889 = vstv %s881
        %v890 = vmul.f32 %v884, %v889
        %v891 = vmul.f32 %v885, %v889
        %v892 = vmul.f32 %v886, %v889
        %v893 = vmul.f32 %v887, %v889
        %v894 = vmul.f32 %v888, %v889
        %v895 = vadd.f32 %v875, %v890
        %v896 = vadd.f32 %v876, %v891
        %v897 = vadd.f32 %v877, %v892
        %v898 = vadd.f32 %v878, %v893
        %v899 = vadd.f32 %v879, %v894
        %s900 = sadd.s32 %s821, 4
        %s901 = sld [smem:[#allocation9 + %s900]]
        %s902 = sadd.s32 %s811, 192
        %s903 = scalar_lea.vmem [#allocation3], %s902
        %v904 = vld [vmem:[%s903] sm:$0xff]
        %v905 = vld [vmem:[%s903 + $0x8] sm:$0xff]
        %v906 = vld [vmem:[%s903 + $0x10] sm:$0xff]
        %v907 = vld [vmem:[%s903 + $0x18] sm:$0xff]
        %v908 = vld [vmem:[%s903 + $0x20] sm:$0x3f]
        %v909 = vstv %s901
        %v910 = vmul.f32 %v904, %v909
        %v911 = vmul.f32 %v905, %v909
        %v912 = vmul.f32 %v906, %v909
        %v913 = vmul.f32 %v907, %v909
        %v914 = vmul.f32 %v908, %v909
        %v915 = vadd.f32 %v895, %v910
        %v916 = vadd.f32 %v896, %v911
        %v917 = vadd.f32 %v897, %v912
        %v918 = vadd.f32 %v898, %v913
        %v919 = vadd.f32 %v899, %v914
        %s920 = sadd.s32 %s821, 5
        %s921 = sld [smem:[#allocation9 + %s920]]
        %s922 = sadd.s32 %s811, 240
        %s923 = scalar_lea.vmem [#allocation3], %s922
        %v924 = vld [vmem:[%s923] sm:$0xff]
        %v925 = vld [vmem:[%s923 + $0x8] sm:$0xff]
        %v926 = vld [vmem:[%s923 + $0x10] sm:$0xff]
        %v927 = vld [vmem:[%s923 + $0x18] sm:$0xff]
        %v928 = vld [vmem:[%s923 + $0x20] sm:$0x3f]
        %v929 = vstv %s921
        %v930 = vmul.f32 %v924, %v929
        %v931 = vmul.f32 %v925, %v929
        %v932 = vmul.f32 %v926, %v929
        %v933 = vmul.f32 %v927, %v929
        %v934 = vmul.f32 %v928, %v929
        %v935 = vadd.f32 %v915, %v930
        %v936 = vadd.f32 %v916, %v931
        %v937 = vadd.f32 %v917, %v932
        %v938 = vadd.f32 %v918, %v933
        %v939 = vadd.f32 %v919, %v934
        %s940 = sadd.s32 %s821, 6
        %s941 = sld [smem:[#allocation9 + %s940]]
        %s942 = sadd.s32 %s811, 288
        %s943 = scalar_lea.vmem [#allocation3], %s942
        %v944 = vld [vmem:[%s943] sm:$0xff]
        %v945 = vld [vmem:[%s943 + $0x8] sm:$0xff]
        %v946 = vld [vmem:[%s943 + $0x10] sm:$0xff]
        %v947 = vld [vmem:[%s943 + $0x18] sm:$0xff]
        %v948 = vld [vmem:[%s943 + $0x20] sm:$0x3f]
        %v949 = vstv %s941
        %v950 = vmul.f32 %v944, %v949
        %v951 = vmul.f32 %v945, %v949
        %v952 = vmul.f32 %v946, %v949
        %v953 = vmul.f32 %v947, %v949
        %v954 = vmul.f32 %v948, %v949
        %v955 = vadd.f32 %v935, %v950
        %v956 = vadd.f32 %v936, %v951
        %v957 = vadd.f32 %v937, %v952
        %v958 = vadd.f32 %v938, %v953
        %v959 = vadd.f32 %v939, %v954
        %s960 = sadd.s32 %s821, 49
        %s961 = sld [smem:[#allocation9 + %s960]]
        %s962 = sadd.s32 %s811, 336
        %s963 = scalar_lea.vmem [#allocation3], %s962
        %v964 = vld [vmem:[%s963] sm:$0xff]
        %v965 = vld [vmem:[%s963 + $0x8] sm:$0xff]
        %v966 = vld [vmem:[%s963 + $0x10] sm:$0xff]
        %v967 = vld [vmem:[%s963 + $0x18] sm:$0xff]
        %v968 = vld [vmem:[%s963 + $0x20] sm:$0x3f]
        %v969 = vstv %s961
        %v970 = vmul.f32 %v964, %v969
        %v971 = vmul.f32 %v965, %v969
        %v972 = vmul.f32 %v966, %v969
        %v973 = vmul.f32 %v967, %v969
        %v974 = vmul.f32 %v968, %v969
        %v975 = vadd.f32 %v955, %v970
        %v976 = vadd.f32 %v956, %v971
        %v977 = vadd.f32 %v957, %v972
        %v978 = vadd.f32 %v958, %v973
        %v979 = vadd.f32 %v959, %v974
        %s980 = sadd.s32 %s821, 50
        %s981 = sld [smem:[#allocation9 + %s980]]
        %s982 = sadd.s32 %s842, 336
        %s983 = scalar_lea.vmem [#allocation3], %s982
        %v984 = vld [vmem:[%s983] sm:$0xff]
        %v985 = vld [vmem:[%s983 + $0x8] sm:$0xff]
        %v986 = vld [vmem:[%s983 + $0x10] sm:$0xff]
        %v987 = vld [vmem:[%s983 + $0x18] sm:$0xff]
        %v988 = vld [vmem:[%s983 + $0x20] sm:$0x3f]
        %v989 = vstv %s981
        %v990 = vmul.f32 %v984, %v989
        %v991 = vmul.f32 %v985, %v989
        %v992 = vmul.f32 %v986, %v989
        %v993 = vmul.f32 %v987, %v989
        %v994 = vmul.f32 %v988, %v989
        %v995 = vadd.f32 %v975, %v990
        %v996 = vadd.f32 %v976, %v991
        %v997 = vadd.f32 %v977, %v992
        %v998 = vadd.f32 %v978, %v993
        %v999 = vadd.f32 %v979, %v994
        %s1000 = sadd.s32 %s821, 51
        %s1001 = sld [smem:[#allocation9 + %s1000]]
        %s1002 = sadd.s32 %s862, 336
        %s1003 = scalar_lea.vmem [#allocation3], %s1002
        %v1004 = vld [vmem:[%s1003] sm:$0xff]
        %v1005 = vld [vmem:[%s1003 + $0x8] sm:$0xff]
        %v1006 = vld [vmem:[%s1003 + $0x10] sm:$0xff]
        %v1007 = vld [vmem:[%s1003 + $0x18] sm:$0xff]
        %v1008 = vld [vmem:[%s1003 + $0x20] sm:$0x3f]
        %v1009 = vstv %s1001
        %v1010 = vmul.f32 %v1004, %v1009
        %v1011 = vmul.f32 %v1005, %v1009
        %v1012 = vmul.f32 %v1006, %v1009
        %v1013 = vmul.f32 %v1007, %v1009
        %v1014 = vmul.f32 %v1008, %v1009
        %v1015 = vadd.f32 %v995, %v1010
        %v1016 = vadd.f32 %v996, %v1011
        %v1017 = vadd.f32 %v997, %v1012
        %v1018 = vadd.f32 %v998, %v1013
        %v1019 = vadd.f32 %v999, %v1014
        %s1020 = sadd.s32 %s821, 52
        %s1021 = sld [smem:[#allocation9 + %s1020]]
        %s1022 = sadd.s32 %s882, 336
        %s1023 = scalar_lea.vmem [#allocation3], %s1022
        %v1024 = vld [vmem:[%s1023] sm:$0xff]
        %v1025 = vld [vmem:[%s1023 + $0x8] sm:$0xff]
        %v1026 = vld [vmem:[%s1023 + $0x10] sm:$0xff]
        %v1027 = vld [vmem:[%s1023 + $0x18] sm:$0xff]
        %v1028 = vld [vmem:[%s1023 + $0x20] sm:$0x3f]
        %v1029 = vstv %s1021
        %v1030 = vmul.f32 %v1024, %v1029
        %v1031 = vmul.f32 %v1025, %v1029
        %v1032 = vmul.f32 %v1026, %v1029
        %v1033 = vmul.f32 %v1027, %v1029
        %v1034 = vmul.f32 %v1028, %v1029
        %v1035 = vadd.f32 %v1015, %v1030
        %v1036 = vadd.f32 %v1016, %v1031
        %v1037 = vadd.f32 %v1017, %v1032
        %v1038 = vadd.f32 %v1018, %v1033
        %v1039 = vadd.f32 %v1019, %v1034
        %s1040 = sadd.s32 %s821, 53
        %s1041 = sld [smem:[#allocation9 + %s1040]]
        %s1042 = sadd.s32 %s902, 336
        %s1043 = scalar_lea.vmem [#allocation3], %s1042
        %v1044 = vld [vmem:[%s1043] sm:$0xff]
        %v1045 = vld [vmem:[%s1043 + $0x8] sm:$0xff]
        %v1046 = vld [vmem:[%s1043 + $0x10] sm:$0xff]
        %v1047 = vld [vmem:[%s1043 + $0x18] sm:$0xff]
        %v1048 = vld [vmem:[%s1043 + $0x20] sm:$0x3f]
        %v1049 = vstv %s1041
        %v1050 = vmul.f32 %v1044, %v1049
        %v1051 = vmul.f32 %v1045, %v1049
        %v1052 = vmul.f32 %v1046, %v1049
        %v1053 = vmul.f32 %v1047, %v1049
        %v1054 = vmul.f32 %v1048, %v1049
        %v1055 = vadd.f32 %v1035, %v1050
        %v1056 = vadd.f32 %v1036, %v1051
        %v1057 = vadd.f32 %v1037, %v1052
        %v1058 = vadd.f32 %v1038, %v1053
        %v1059 = vadd.f32 %v1039, %v1054
        %s1060 = sadd.s32 %s821, 54
        %s1061 = sld [smem:[#allocation9 + %s1060]]
        %s1062 = sadd.s32 %s922, 336
        %s1063 = scalar_lea.vmem [#allocation3], %s1062
        %v1064 = vld [vmem:[%s1063] sm:$0xff]
        %v1065 = vld [vmem:[%s1063 + $0x8] sm:$0xff]
        %v1066 = vld [vmem:[%s1063 + $0x10] sm:$0xff]
        %v1067 = vld [vmem:[%s1063 + $0x18] sm:$0xff]
        %v1068 = vld [vmem:[%s1063 + $0x20] sm:$0x3f]
        %v1069 = vstv %s1061
        %v1070 = vmul.f32 %v1064, %v1069
        %v1071 = vmul.f32 %v1065, %v1069
        %v1072 = vmul.f32 %v1066, %v1069
        %v1073 = vmul.f32 %v1067, %v1069
        %v1074 = vmul.f32 %v1068, %v1069
        %v1075 = vadd.f32 %v1055, %v1070
        %v1076 = vadd.f32 %v1056, %v1071
        %v1077 = vadd.f32 %v1057, %v1072
        %v1078 = vadd.f32 %v1058, %v1073
        %v1079 = vadd.f32 %v1059, %v1074
        %s1080 = sadd.s32 %s821, 55
        %s1081 = sld [smem:[#allocation9 + %s1080]]
        %s1082 = sadd.s32 %s942, 336
        %s1083 = scalar_lea.vmem [#allocation3], %s1082
        %v1084 = vld [vmem:[%s1083] sm:$0xff]
        %v1085 = vld [vmem:[%s1083 + $0x8] sm:$0xff]
        %v1086 = vld [vmem:[%s1083 + $0x10] sm:$0xff]
        %v1087 = vld [vmem:[%s1083 + $0x18] sm:$0xff]
        %v1088 = vld [vmem:[%s1083 + $0x20] sm:$0x3f]
        %v1089 = vstv %s1081
        %v1090 = vmul.f32 %v1084, %v1089
        %v1091 = vmul.f32 %v1085, %v1089
        %v1092 = vmul.f32 %v1086, %v1089
        %v1093 = vmul.f32 %v1087, %v1089
        %v1094 = vmul.f32 %v1088, %v1089
        %v1095 = vadd.f32 %v1075, %v1090
        %v1096 = vadd.f32 %v1076, %v1091
        %v1097 = vadd.f32 %v1077, %v1092
        %v1098 = vadd.f32 %v1078, %v1093
        %v1099 = vadd.f32 %v1079, %v1094
        %1100 = vst.msk [vmem:[#allocation4] sm:$0xff] %vm338, %v1095
        %1101 = vst.msk [vmem:[#allocation4 + $0x8] sm:$0xff] %vm338, %v1096
        %1102 = vst.msk [vmem:[#allocation4 + $0x10] sm:$0xff] %vm338, %v1097
        %1103 = vst.msk [vmem:[#allocation4 + $0x18] sm:$0xff] %vm338, %v1098
        %1104 = vst.msk [vmem:[#allocation4 + $0x20] sm:$0x3f] %vm808, %v1099
      $region34: #{tpu_custom_call.1} parent=28 // loop_footer
        %s815 = sadd.s32 1, %s811
      $region35: #{tpu_custom_call.1} parent=28 // loop_footer_branch
        %810 = sbr.rel target = $region31
      $region36: #{tpu_custom_call.1} parent=28 // loop_exit
        _
      %v1105 = vld [vmem:[#allocation4] sm:$0xff]
      %v1106 = vld [vmem:[#allocation4 + $0x8] sm:$0xff]
      %v1107 = vxor.u32 %v1105, 2147483648
      %v1108 = vxor.u32 %v1106, 2147483648
      %v1109 = vmul.f32 %v1107, 1.442695
      %v1110 = vpow.pop %v1109
      %v1111 = vmul.f32 %v1108, 1.442695
      %v1112 = vpow.pop %v1111
      %v1113 = vadd.f32 %v1110, 1.0
      %v1114 = vadd.f32 %v1112, 1.0
      %v1115 = vrcp.pop %v1113
      %v1116 = vmul.f32 1.0, %v1115
      %v1117 = vrcp.pop %v1114
      %v1118 = vmul.f32 1.0, %v1117
      %1119 = vst.msk [vmem:[#allocation10] sm:$0xff] %vm338, %v1116
      %1120 = vst.msk [vmem:[#allocation10 + $0x8] sm:$0xff] %vm338, %v1118
      %v1121 = vld [vmem:[#allocation4 + $0x16] sm:$0xff]
      %v1122 = vld [vmem:[#allocation4 + $0x1e] sm:$0xff]
      %v1123 = vxor.u32 %v1121, 2147483648
      %v1124 = vxor.u32 %v1122, 2147483648
      %v1125 = vmul.f32 %v1123, 1.442695
      %v1126 = vpow.pop %v1125
      %v1127 = vmul.f32 %v1124, 1.442695
      %v1128 = vpow.pop %v1127
      %v1129 = vadd.f32 %v1126, 1.0
      %v1130 = vadd.f32 %v1128, 1.0
      %v1131 = vrcp.pop %v1129
      %v1132 = vmul.f32 1.0, %v1131
      %v1133 = vrcp.pop %v1130
      %v1134 = vmul.f32 1.0, %v1133
      %s1135 = scalar_lea.vmem [#allocation10], 16
      %1136 = vst.msk [vmem:[%s1135] sm:$0xff] %vm338, %v1132
      %1137 = vst.msk [vmem:[%s1135 + $0x8] sm:$0xff] %vm338, %v1134
    $region29: #{tpu_custom_call.1} parent=1 // pred_fallthru
      _
    // Predicated region
    $region37: #{tpu_custom_call.1} parent=1 // pred_check
      _
    $region38: #{tpu_custom_call.1} parent=1 // pred_check_branch
      %1139 = sbr.rel (0) target = $region40
    $region39: #{tpu_custom_call.1} parent=1 // pred_region
      %s1141 = ssub.s32 512, 512
      %1142 = vsyncadd [#allocation7], %s1141
      %s1143 = sshll.u32 [#allocation10], 4
      %s1144 = int_to_ptr.vmem [resolvable:$true] %s1143
      %1149 = dma.vmem_to_hbm [thread:$0]  %s1144, 512, %s2, [#allocation7], 128, 128, 8
    $region40: #{tpu_custom_call.1} parent=1 // pred_fallthru
      _
    // Predicated region
    $region41: #{tpu_custom_call.1} parent=1 // pred_check
      _
    $region42: #{tpu_custom_call.1} parent=1 // pred_check_branch
      %1151 = sbr.rel (0) target = $region44
    $region43: #{tpu_custom_call.1} parent=1 // pred_region
      %1152 = dma.done [#allocation7], 512
    $region44: #{tpu_custom_call.1} parent=1 // pred_fallthru
      _
    %1153 = vsyncpa [#allocation6], 1
    %1154 = vsyncpa [#allocation7], 1
    %1155 = vsyncpa [#allocation8], 1

</llo_original>
